<compile_context>
chip_gen: v7x
topology: tpu7x:2x2x1
jax: 0.10.0
libtpu: 0.0.40
codegen_flags: <defaults>
</compile_context>

<pallas_src>
import functools

import jax
import jax.numpy as jnp
from jax import lax
from jax.experimental import pallas as pl
from jax.experimental.pallas import tpu as pltpu


# ----------------------------------------------------------------------------
# Banded conv weights: fold the 3x3 width taps (and width zero-padding) into one stacked
# (3*W*Cin, W*Cout) matrix; the three row offsets dh in {0,1,2} are concatenated along K so
# a single MXU matmul per conv consumes [row_above, row, row_below].
# ----------------------------------------------------------------------------
def _banded_conv_weights(w, width):
    """PyTorch conv weight (Cout, Cin, 3, 3) -> stacked (3*width*Cin, width*Cout) band matrix.

    Band dh maps an input row laid out as (width*Cin,) [channels fastest] to the contribution
    of input row (h + dh - 1) to output row h; the width zero-padding is encoded in the band
    sparsity (terms with w_in outside [0, width) are simply absent).
    """
    cout, cin = w.shape[0], w.shape[1]
    pos = jnp.arange(width)
    dw = jnp.arange(3)
    # band[dw, w_in, w_out] = 1  iff  w_in == w_out + dw - 1
    band = (pos[None, :, None] == pos[None, None, :] + dw[:, None, None] - 1).astype(jnp.float32)
    # m[dh, w_in, ci, w_out, co] = sum_dw band[dw, w_in, w_out] * w[co, ci, dh, dw]
    m = jnp.einsum("dio,kchd->hicok", band, w.astype(jnp.float32))
    return m.reshape(3 * width * cin, width * cout)


# ----------------------------------------------------------------------------
# Kernel 1: the whole implicit block (u = x + f(x); n_iters of  y <- u - g(y)) fused.
# One block of sublane-stacked images per grid step; activations + weights resident in VMEM.
# ----------------------------------------------------------------------------
def _implicit_block_kernel(x_ref, w1a_ref, w1b_ref, w2a_ref, w2b_ref, y_ref, *,
                           img_h, n_iters, unroll):
    M, wc_in = x_ref.shape          # M = (#images in this block) * img_h
    wc_hid = w1a_ref.shape[1]
    x = x_ref[...]

    # Per-image edge masks for the row shifts (3x3 height zero-padding at the top / bottom
    # row of every image in the sublane-stacked batch).  Built once, reused every iteration.
    def edge_masks(width):
        h = lax.broadcasted_iota(jnp.int32, (M, width), 0) % img_h
        return ((h != 0).astype(jnp.float32), (h != img_h - 1).astype(jnp.float32))

    masks = {wc_in: edge_masks(wc_in)}
    if wc_hid not in masks:
        masks[wc_hid] = edge_masks(wc_hid)

    def conv3x3_relu(a, w_ref):
        # Row shifts via XLU sublane rolls (off the MXU critical path) instead of shift matmuls.
        not_top, not_bot = masks[a.shape[-1]]
        a_prev = pltpu.roll(a, shift=1, axis=0) * not_top       # a_prev[m] = a[m-1], 0 at image top
        a_next = pltpu.roll(a, shift=M - 1, axis=0) * not_bot   # a_next[m] = a[m+1], 0 at image bottom
        # All three row taps fused into one wide-K MXU matmul.
        stacked = jnp.concatenate([a_prev, a, a_next], axis=-1)
        acc = jnp.dot(stacked, w_ref[...], preferred_element_type=jnp.float32)
        return jnp.maximum(acc, 0.0)

    def f(a):  # nnet1
        return conv3x3_relu(conv3x3_relu(a, w1a_ref), w1b_ref)

    def g(a):  # nnet2
        return conv3x3_relu(conv3x3_relu(a, w2a_ref), w2b_ref)

    u = x + f(x)                                   # right-hand side, stays on-chip

    def body(_, yy):
        for _ in range(unroll):                    # static partial unroll: overlaps the VPU
            yy = u - g(yy)                         # epilogue of iter i with MXU pushes of i+1
        return yy

    # TODO(synk): an early-exit lax.while_loop on ||y_new - y||_inf < tol would cut ~1.5-2x
    # iterations; a fixed count is kept to match the fixed-point reference semantics.
    y = lax.fori_loop(0, n_iters // unroll, body, x)
    y_ref[...] = y.astype(y_ref.dtype)


def implicit_block_solve(x2d, ws, *, img_h, rows_per_step, fixed_point_iters):
    """x2d: (N*H, W*Cin) lane-dense activations; ws: dict of stacked band weight matrices."""
    m_total, wc_in = x2d.shape
    assert m_total % rows_per_step == 0
    unroll = next(u for u in (4, 3, 2, 1) if fixed_point_iters % u == 0)
    kernel = functools.partial(_implicit_block_kernel, img_h=img_h,
                               n_iters=fixed_point_iters, unroll=unroll)

    def weight_spec(w):
        # Whole weight matrix resident in VMEM (constant block index every grid step).
        # VMEM guard: the 4 stacked band matrices are ~0.4 MiB here, but they scale as
        # O(W^2 * C^2); re-check against v7x's 64 MiB VMEM if W or channel counts grow.
        return pl.BlockSpec(w.shape, lambda n: (0, 0))

    return pl.pallas_call(
        kernel,
        out_shape=jax.ShapeDtypeStruct((m_total, wc_in), jnp.float32),
        grid=(m_total // rows_per_step,),
        in_specs=[
            pl.BlockSpec((rows_per_step, wc_in), lambda n: (n, 0)),
            weight_spec(ws["w1a"]), weight_spec(ws["w1b"]),
            weight_spec(ws["w2a"]), weight_spec(ws["w2b"]),
        ],
        out_specs=pl.BlockSpec((rows_per_step, wc_in), lambda n: (n, 0)),
        compiler_params=pltpu.CompilerParams(dimension_semantics=("parallel",)),
    )(x2d, ws["w1a"], ws["w1b"], ws["w2a"], ws["w2b"])


# ----------------------------------------------------------------------------
# Kernel 2: downsample = 1x1 conv (no bias) + BatchNorm2d (batch stats) + ReLU, entirely in
# the lane-dense (N*H, W*C) layout.  Single invocation over the whole batch (BN statistics
# need every N*H*W position).
# ----------------------------------------------------------------------------
def _downsample_kernel(y_ref, bd_ref, pool_ref, gamma_ref, beta_ref, out_ref, *, eps):
    # 1x1 conv as one block-diagonal matmul: (N*H, W*Cin) @ (W*Cin, W*Cout).
    z = jnp.dot(y_ref[...], bd_ref[...], preferred_element_type=jnp.float32)
    # BN train-mode statistics over (N, H, W) per channel: sublane column-sum, then a
    # channel-pooling matmul (pool = onehot @ onehot.T / (N*H*W)) that both averages over the
    # width positions and spreads the per-channel result back across the W*Cout lanes.
    mean_l = jnp.dot(jnp.sum(z, axis=0, keepdims=True), pool_ref[...],
                     preferred_element_type=jnp.float32)
    centered = z - mean_l
    var_l = jnp.dot(jnp.sum(centered * centered, axis=0, keepdims=True), pool_ref[...],
                    preferred_element_type=jnp.float32)          # biased var = BN train mode
    zn = centered * lax.rsqrt(var_l + eps)
    out_ref[...] = jnp.maximum(zn * gamma_ref[...] + beta_ref[...], 0.0).astype(out_ref.dtype)


def downsample_conv1x1_bn_relu(y2d, bd, pool, gamma_l, beta_l, eps=1e-5):
    m_total = y2d.shape[0]
    wcout = bd.shape[1]
    return pl.pallas_call(
        functools.partial(_downsample_kernel, eps=eps),
        out_shape=jax.ShapeDtypeStruct((m_total, wcout), jnp.float32),
    )(y2d, bd, pool, gamma_l, beta_l)


# ----------------------------------------------------------------------------
# BasicImplicitBlock forward (NCHW in / NCHW out, like the PyTorch module)
# ----------------------------------------------------------------------------
def _pick_rows_per_step(n_images, img_h, target_rows=128):
    # Stack as many whole images as possible onto the MXU sublane (M) axis (amortizes the
    # fixed per-matmul latency and runs the fixed-point loop once per stack), capped near
    # target_rows; keep the tile a divisor of the batch and 8-sublane aligned.
    best = n_images * img_h          # fall back: whole batch in one block (always legal)
    for b in range(1, n_images + 1):
        rows = b * img_h
        if n_images % b == 0 and rows <= max(target_rows, img_h) and rows % 8 == 0:
            best = rows
    return best


def basic_implicit_block_forward(x_nchw, params, *, fixed_point_iters=60):
    N, Cin, H, W = x_nchw.shape
    Cout = params["w_ds"].shape[0]

    # NCHW -> lane-dense (N*H, W*Cin): channels fastest within the lane axis, batch stacked
    # onto the sublane axis.
    x2d = jnp.transpose(x_nchw.astype(jnp.float32), (0, 2, 3, 1)).reshape(N * H, W * Cin)

    ws = {k: _banded_conv_weights(params[k], W) for k in ("w1a", "w1b", "w2a", "w2b")}

    rows_per_step = _pick_rows_per_step(N, H)
    # TODO(synk): on v7x (2 TensorCores) prefer >=2 grid steps when N*H is large; at this size
    # the whole batch fits one step, which is optimal for the single-TC v5e/v6e.
    y2d = implicit_block_solve(x2d, ws, img_h=H, rows_per_step=rows_per_step,
                               fixed_point_iters=fixed_point_iters)
    # TODO(synk): `restore=True` on the first call only resets the original Broyden-solver
    # cache; the fixed-iteration Banach solve has no persistent state to restore.

    # Downsample stays lane-dense: block-diagonal matmul for the 1x1 conv, channel-pooling
    # matmul for the BN statistics.  No relayout between the two kernels.
    w_ds2d = params["w_ds"].reshape(Cout, Cin).T.astype(jnp.float32)                  # (Cin, Cout)
    bd = jnp.kron(jnp.eye(W, dtype=jnp.float32), w_ds2d)                              # (W*Cin, W*Cout)
    onehot = jnp.kron(jnp.ones((W, 1), jnp.float32), jnp.eye(Cout, dtype=jnp.float32))  # (W*Cout, Cout)
    pool = (onehot @ onehot.T) / float(N * H * W)                                      # (W*Cout, W*Cout)
    gamma_l = jnp.tile(params["bn_gamma"].astype(jnp.float32), W).reshape(1, W * Cout)
    beta_l = jnp.tile(params["bn_beta"].astype(jnp.float32), W).reshape(1, W * Cout)

    out2d = downsample_conv1x1_bn_relu(y2d, bd, pool, gamma_l, beta_l)
    # TODO(synk): downsample stride != 1 is not implemented (this configuration uses stride=1).
    return jnp.transpose(out2d.reshape(N, H, W, Cout), (0, 3, 1, 2))                   # -> NCHW


# ----------------------------------------------------------------------------
# Pure-XLA reference (for a structural correctness check)
# ----------------------------------------------------------------------------
def _reference_forward(x_nchw, params, *, fixed_point_iters=60, eps=1e-5):
    hi = lax.Precision.HIGHEST

    def conv3(x, w):
        return lax.conv_general_dilated(x, w, (1, 1), ((1, 1), (1, 1)),
                                        dimension_numbers=("NCHW", "OIHW", "NCHW"),
                                        precision=hi)

    relu = lambda t: jnp.maximum(t, 0.0)
    f = lambda t: relu(conv3(relu(conv3(t, params["w1a"])), params["w1b"]))
    g = lambda t: relu(conv3(relu(conv3(t, params["w2a"])), params["w2b"]))

    x = x_nchw.astype(jnp.float32)
    u = x + f(x)
    y = lax.fori_loop(0, fixed_point_iters, lambda _, t: u - g(t), x)

    z = lax.conv_general_dilated(y, params["w_ds"], (1, 1), ((0, 0), (0, 0)),
                                 dimension_numbers=("NCHW", "OIHW", "NCHW"), precision=hi)
    mean = jnp.mean(z, axis=(0, 2, 3), keepdims=True)
    var = jnp.mean((z - mean) ** 2, axis=(0, 2, 3), keepdims=True)
    zn = (z - mean) * lax.rsqrt(var + eps)
    gm = params["bn_gamma"].reshape(1, -1, 1, 1)
    bt = params["bn_beta"].reshape(1, -1, 1, 1)
    return jnp.maximum(zn * gm + bt, 0.0)


# ----------------------------------------------------------------------------
# Deterministic parameter construction (emulates spectrally-normalized convs)
# ----------------------------------------------------------------------------
def _make_spectral_conv3x3(key, cin, cout, coeff):
    # Rescale so a rigorous bound on the conv operator 2-norm (3 * ||W||_F) equals coeff < 1,
    # emulating spectral normalization; guarantees both nets are contractive so the
    # fixed-point iteration converges.  PyTorch (Cout, Cin, 3, 3) layout.
    w = jax.random.normal(key, (cout, cin, 3, 3), jnp.float32)
    return w * (coeff / (3.0 * jnp.linalg.norm(w)))


if __name__ == "__main__":
    N, in_planes, hidden, planes, H, W = 2, 4, 8, 8, 16, 16
    coeff = 0.9  # args.coeff in the original script

    key = jax.random.PRNGKey(0)
    ks = jax.random.split(key, 6)
    params = {
        "w1a": _make_spectral_conv3x3(ks[0], in_planes, hidden, coeff),
        "w1b": _make_spectral_conv3x3(ks[1], hidden, in_planes, coeff),
        "w2a": _make_spectral_conv3x3(ks[2], in_planes, hidden, coeff),
        "w2b": _make_spectral_conv3x3(ks[3], hidden, in_planes, coeff),
        "w_ds": jax.random.normal(ks[4], (planes, in_planes, 1, 1), jnp.float32) * 0.3,
        "bn_gamma": jnp.ones((planes,), jnp.float32),   # BatchNorm2d default init
        "bn_beta": jnp.zeros((planes,), jnp.float32),
    }
    x = jax.random.normal(ks[5], (N, in_planes, H, W), jnp.float32)  # NCHW like PyTorch

    fwd = jax.jit(functools.partial(basic_implicit_block_forward, fixed_point_iters=60))
    out = jax.block_until_ready(fwd(x, params))
    assert out.shape == (N, planes, H, W), out.shape
    assert bool(jnp.all(jnp.isfinite(out)))

    # Structural correctness check vs. a pure-XLA reference (loose tolerance to stay robust
    # across MXU / conv precision modes; indexing or shift-direction bugs would be O(1) off).
    ref = jax.jit(functools.partial(_reference_forward, fixed_point_iters=60))(x, params)
    err = float(jnp.max(jnp.abs(out - ref)))
    scale = float(jnp.max(jnp.abs(ref))) + 1e-6
    assert err <= 0.05 * scale + 1e-3, f"kernel vs reference mismatch: err={err}, ref_max={scale}"

    print("KERNEL_OK")
</pallas_src>

<mosaic_0001>
module attributes {stable_mosaic.version = 11 : i64} {
  func.func @_implicit_block_kernel(%arg0: i32, %arg1: memref<32x64xf32, #tpu.memory_space<vmem>>, %arg2: memref<192x128xf32, #tpu.memory_space<vmem>>, %arg3: memref<384x64xf32, #tpu.memory_space<vmem>>, %arg4: memref<192x128xf32, #tpu.memory_space<vmem>>, %arg5: memref<384x64xf32, #tpu.memory_space<vmem>>, %arg6: memref<32x64xf32, #tpu.memory_space<vmem>>) attributes {dimension_semantics = [#tpu.dimension_semantics<parallel>], iteration_bounds = array<i64: 1>, scalar_prefetch = 0 : i64, scratch_operands = 0 : i64, tpu.core_type = #tpu.core_type<tc>, window_params = [{transform_indices = @transform_0, window_bounds = array<i64: 32, 64>}, {pipeline_mode = #tpu.pipeline_mode<synchronous>, transform_indices = @transform_1, window_bounds = array<i64: 192, 128>}, {pipeline_mode = #tpu.pipeline_mode<synchronous>, transform_indices = @transform_2, window_bounds = array<i64: 384, 64>}, {pipeline_mode = #tpu.pipeline_mode<synchronous>, transform_indices = @transform_3, window_bounds = array<i64: 192, 128>}, {pipeline_mode = #tpu.pipeline_mode<synchronous>, transform_indices = @transform_4, window_bounds = array<i64: 384, 64>}, {transform_indices = @transform_5, window_bounds = array<i64: 32, 64>}]} {
    %c0 = arith.constant 0 : index
    %c0_0 = arith.constant 0 : index
    %0 = vector.load %arg1[%c0, %c0_0] : memref<32x64xf32, #tpu.memory_space<vmem>>, vector<32x64xf32>
    %1 = tpu.iota {dimensions = array<i32: 0>} : vector<32x64xi32>
    %c16_i32 = arith.constant 16 : i32
    %c0_i32 = arith.constant 0 : i32
    %2 = arith.cmpi eq, %c16_i32, %c0_i32 : i32
    %c1_i32 = arith.constant 1 : i32
    %3 = arith.select %2, %c1_i32, %c16_i32 : i32
    %4 = vector.broadcast %3 : i32 to vector<32x64xi32>
    %5 = arith.remsi %1, %4 : vector<32x64xi32>
    %c0_i32_1 = arith.constant 0 : i32
    %6 = vector.broadcast %c0_i32_1 : i32 to vector<32x64xi32>
    %7 = arith.cmpi ne, %5, %6 : vector<32x64xi32>
    %c0_i32_2 = arith.constant 0 : i32
    %8 = vector.broadcast %c0_i32_2 : i32 to vector<32x64xi32>
    %9 = arith.cmpi slt, %5, %8 : vector<32x64xi32>
    %c0_i32_3 = arith.constant 0 : i32
    %10 = arith.cmpi slt, %3, %c0_i32_3 : i32
    %11 = vector.broadcast %10 : i1 to vector<32x64xi1>
    %12 = vector.broadcast %11 : vector<32x64xi1> to vector<32x64xi1>
    %13 = arith.xori %9, %12 : vector<32x64xi1>
    %14 = arith.andi %13, %7 : vector<32x64xi1>
    %15 = vector.broadcast %3 : i32 to vector<32x64xi32>
    %16 = arith.addi %5, %15 : vector<32x64xi32>
    %17 = arith.select %14, %16, %5 : vector<32x64xi1>, vector<32x64xi32>
    %c0_i32_4 = arith.constant 0 : i32
    %18 = vector.broadcast %c0_i32_4 : i32 to vector<32x64xi32>
    %19 = arith.cmpi ne, %17, %18 : vector<32x64xi32>
    %20 = arith.extui %19 : vector<32x64xi1> to vector<32x64xi32>
    %21 = arith.sitofp %20 : vector<32x64xi32> to vector<32x64xf32>
    %c15_i32 = arith.constant 15 : i32
    %22 = vector.broadcast %c15_i32 : i32 to vector<32x64xi32>
    %23 = arith.cmpi ne, %17, %22 : vector<32x64xi32>
    %24 = arith.extui %23 : vector<32x64xi1> to vector<32x64xi32>
    %25 = arith.sitofp %24 : vector<32x64xi32> to vector<32x64xf32>
    %26 = tpu.iota {dimensions = array<i32: 0>} : vector<32x128xi32>
    %c16_i32_5 = arith.constant 16 : i32
    %c0_i32_6 = arith.constant 0 : i32
    %27 = arith.cmpi eq, %c16_i32_5, %c0_i32_6 : i32
    %c1_i32_7 = arith.constant 1 : i32
    %28 = arith.select %27, %c1_i32_7, %c16_i32_5 : i32
    %29 = vector.broadcast %28 : i32 to vector<32x128xi32>
    %30 = arith.remsi %26, %29 : vector<32x128xi32>
    %c0_i32_8 = arith.constant 0 : i32
    %31 = vector.broadcast %c0_i32_8 : i32 to vector<32x128xi32>
    %32 = arith.cmpi ne, %30, %31 : vector<32x128xi32>
    %c0_i32_9 = arith.constant 0 : i32
    %33 = vector.broadcast %c0_i32_9 : i32 to vector<32x128xi32>
    %34 = arith.cmpi slt, %30, %33 : vector<32x128xi32>
    %c0_i32_10 = arith.constant 0 : i32
    %35 = arith.cmpi slt, %28, %c0_i32_10 : i32
    %36 = vector.broadcast %35 : i1 to vector<32x128xi1>
    %37 = vector.broadcast %36 : vector<32x128xi1> to vector<32x128xi1>
    %38 = arith.xori %34, %37 : vector<32x128xi1>
    %39 = arith.andi %38, %32 : vector<32x128xi1>
    %40 = vector.broadcast %28 : i32 to vector<32x128xi32>
    %41 = arith.addi %30, %40 : vector<32x128xi32>
    %42 = arith.select %39, %41, %30 : vector<32x128xi1>, vector<32x128xi32>
    %c0_i32_11 = arith.constant 0 : i32
    %43 = vector.broadcast %c0_i32_11 : i32 to vector<32x128xi32>
    %44 = arith.cmpi ne, %42, %43 : vector<32x128xi32>
    %45 = arith.extui %44 : vector<32x128xi1> to vector<32x128xi32>
    %46 = arith.sitofp %45 : vector<32x128xi32> to vector<32x128xf32>
    %c15_i32_12 = arith.constant 15 : i32
    %47 = vector.broadcast %c15_i32_12 : i32 to vector<32x128xi32>
    %48 = arith.cmpi ne, %42, %47 : vector<32x128xi32>
    %49 = arith.extui %48 : vector<32x128xi1> to vector<32x128xi32>
    %50 = arith.sitofp %49 : vector<32x128xi32> to vector<32x128xf32>
    %c1_i32_13 = arith.constant 1 : i32
    %51 = tpu.dynamic_rotate %0 by %c1_i32_13 dim 0 : vector<32x64xf32>, i32 -> vector<32x64xf32>
    %52 = arith.mulf %51, %21 : vector<32x64xf32>
    %c31_i32 = arith.constant 31 : i32
    %53 = tpu.dynamic_rotate %0 by %c31_i32 dim 0 : vector<32x64xf32>, i32 -> vector<32x64xf32>
    %54 = arith.mulf %53, %25 : vector<32x64xf32>
    %55 = tpu.concatenate %52, %0, %54 in 1 : vector<32x64xf32>, vector<32x64xf32>, vector<32x64xf32> -> vector<32x192xf32>
    %c0_14 = arith.constant 0 : index
    %c0_15 = arith.constant 0 : index
    %56 = vector.load %arg2[%c0_14, %c0_15] : memref<192x128xf32, #tpu.memory_space<vmem>>, vector<192x128xf32>
    %cst = arith.constant dense<0.000000e+00> : vector<32x128xf32>
    %57 = tpu.matmul %55, %56, %cst {dimension_numbers = #tpu.dot_dimension_numbers<[1], [0], [0], [1], [0, 0, 1, 1], [], []>} : vector<32x192xf32>, vector<192x128xf32>, vector<32x128xf32> -> vector<32x128xf32>
    %cst_16 = arith.constant 0.000000e+00 : f32
    %58 = vector.broadcast %cst_16 : f32 to vector<32x128xf32>
    %59 = arith.maximumf %57, %58 : vector<32x128xf32>
    %c1_i32_17 = arith.constant 1 : i32
    %60 = tpu.dynamic_rotate %59 by %c1_i32_17 dim 0 : vector<32x128xf32>, i32 -> vector<32x128xf32>
    %61 = arith.mulf %60, %46 : vector<32x128xf32>
    %c31_i32_18 = arith.constant 31 : i32
    %62 = tpu.dynamic_rotate %59 by %c31_i32_18 dim 0 : vector<32x128xf32>, i32 -> vector<32x128xf32>
    %63 = arith.mulf %62, %50 : vector<32x128xf32>
    %64 = tpu.concatenate %61, %59, %63 in 1 : vector<32x128xf32>, vector<32x128xf32>, vector<32x128xf32> -> vector<32x384xf32>
    %c0_19 = arith.constant 0 : index
    %c0_20 = arith.constant 0 : index
    %65 = vector.load %arg3[%c0_19, %c0_20] : memref<384x64xf32, #tpu.memory_space<vmem>>, vector<384x64xf32>
    %cst_21 = arith.constant dense<0.000000e+00> : vector<32x64xf32>
    %66 = tpu.matmul %64, %65, %cst_21 {dimension_numbers = #tpu.dot_dimension_numbers<[1], [0], [0], [1], [0, 0, 1, 1], [], []>} : vector<32x384xf32>, vector<384x64xf32>, vector<32x64xf32> -> vector<32x64xf32>
    %cst_22 = arith.constant 0.000000e+00 : f32
    %67 = vector.broadcast %cst_22 : f32 to vector<32x64xf32>
    %68 = arith.maximumf %66, %67 : vector<32x64xf32>
    %69 = arith.addf %0, %68 : vector<32x64xf32>
    %c0_i32_23 = arith.constant 0 : i32
    %c15_i32_24 = arith.constant 15 : i32
    %70 = arith.addi %c0_i32_23, %c15_i32_24 : i32
    %c1_i32_25 = arith.constant 1 : i32
    %71 = scf.for %arg7 = %c0_i32_23 to %70 step %c1_i32_25 iter_args(%arg8 = %0) -> (vector<32x64xf32>)  : i32 {
      %c1_i32_28 = arith.constant 1 : i32
      %73 = tpu.dynamic_rotate %arg8 by %c1_i32_28 dim 0 : vector<32x64xf32>, i32 -> vector<32x64xf32>
      %74 = arith.mulf %73, %21 : vector<32x64xf32>
      %c31_i32_29 = arith.constant 31 : i32
      %75 = tpu.dynamic_rotate %arg8 by %c31_i32_29 dim 0 : vector<32x64xf32>, i32 -> vector<32x64xf32>
      %76 = arith.mulf %75, %25 : vector<32x64xf32>
      %77 = tpu.concatenate %74, %arg8, %76 in 1 : vector<32x64xf32>, vector<32x64xf32>, vector<32x64xf32> -> vector<32x192xf32>
      %c0_30 = arith.constant 0 : index
      %c0_31 = arith.constant 0 : index
      %78 = vector.load %arg4[%c0_30, %c0_31] : memref<192x128xf32, #tpu.memory_space<vmem>>, vector<192x128xf32>
      %cst_32 = arith.constant dense<0.000000e+00> : vector<32x128xf32>
      %79 = tpu.matmul %77, %78, %cst_32 {dimension_numbers = #tpu.dot_dimension_numbers<[1], [0], [0], [1], [0, 0, 1, 1], [], []>} : vector<32x192xf32>, vector<192x128xf32>, vector<32x128xf32> -> vector<32x128xf32>
      %cst_33 = arith.constant 0.000000e+00 : f32
      %80 = vector.broadcast %cst_33 : f32 to vector<32x128xf32>
      %81 = arith.maximumf %79, %80 : vector<32x128xf32>
      %c1_i32_34 = arith.constant 1 : i32
      %82 = tpu.dynamic_rotate %81 by %c1_i32_34 dim 0 : vector<32x128xf32>, i32 -> vector<32x128xf32>
      %83 = arith.mulf %82, %46 : vector<32x128xf32>
      %c31_i32_35 = arith.constant 31 : i32
      %84 = tpu.dynamic_rotate %81 by %c31_i32_35 dim 0 : vector<32x128xf32>, i32 -> vector<32x128xf32>
      %85 = arith.mulf %84, %50 : vector<32x128xf32>
      %86 = tpu.concatenate %83, %81, %85 in 1 : vector<32x128xf32>, vector<32x128xf32>, vector<32x128xf32> -> vector<32x384xf32>
      %c0_36 = arith.constant 0 : index
      %c0_37 = arith.constant 0 : index
      %87 = vector.load %arg5[%c0_36, %c0_37] : memref<384x64xf32, #tpu.memory_space<vmem>>, vector<384x64xf32>
      %cst_38 = arith.constant dense<0.000000e+00> : vector<32x64xf32>
      %88 = tpu.matmul %86, %87, %cst_38 {dimension_numbers = #tpu.dot_dimension_numbers<[1], [0], [0], [1], [0, 0, 1, 1], [], []>} : vector<32x384xf32>, vector<384x64xf32>, vector<32x64xf32> -> vector<32x64xf32>
      %cst_39 = arith.constant 0.000000e+00 : f32
      %89 = vector.broadcast %cst_39 : f32 to vector<32x64xf32>
      %90 = arith.maximumf %88, %89 : vector<32x64xf32>
      %91 = arith.subf %69, %90 : vector<32x64xf32>
      %c1_i32_40 = arith.constant 1 : i32
      %92 = tpu.dynamic_rotate %91 by %c1_i32_40 dim 0 : vector<32x64xf32>, i32 -> vector<32x64xf32>
      %93 = arith.mulf %92, %21 : vector<32x64xf32>
      %c31_i32_41 = arith.constant 31 : i32
      %94 = tpu.dynamic_rotate %91 by %c31_i32_41 dim 0 : vector<32x64xf32>, i32 -> vector<32x64xf32>
      %95 = arith.mulf %94, %25 : vector<32x64xf32>
      %96 = tpu.concatenate %93, %91, %95 in 1 : vector<32x64xf32>, vector<32x64xf32>, vector<32x64xf32> -> vector<32x192xf32>
      %c0_42 = arith.constant 0 : index
      %c0_43 = arith.constant 0 : index
      %97 = vector.load %arg4[%c0_42, %c0_43] : memref<192x128xf32, #tpu.memory_space<vmem>>, vector<192x128xf32>
      %cst_44 = arith.constant dense<0.000000e+00> : vector<32x128xf32>
      %98 = tpu.matmul %96, %97, %cst_44 {dimension_numbers = #tpu.dot_dimension_numbers<[1], [0], [0], [1], [0, 0, 1, 1], [], []>} : vector<32x192xf32>, vector<192x128xf32>, vector<32x128xf32> -> vector<32x128xf32>
      %cst_45 = arith.constant 0.000000e+00 : f32
      %99 = vector.broadcast %cst_45 : f32 to vector<32x128xf32>
      %100 = arith.maximumf %98, %99 : vector<32x128xf32>
      %c1_i32_46 = arith.constant 1 : i32
      %101 = tpu.dynamic_rotate %100 by %c1_i32_46 dim 0 : vector<32x128xf32>, i32 -> vector<32x128xf32>
      %102 = arith.mulf %101, %46 : vector<32x128xf32>
      %c31_i32_47 = arith.constant 31 : i32
      %103 = tpu.dynamic_rotate %100 by %c31_i32_47 dim 0 : vector<32x128xf32>, i32 -> vector<32x128xf32>
      %104 = arith.mulf %103, %50 : vector<32x128xf32>
      %105 = tpu.concatenate %102, %100, %104 in 1 : vector<32x128xf32>, vector<32x128xf32>, vector<32x128xf32> -> vector<32x384xf32>
      %c0_48 = arith.constant 0 : index
      %c0_49 = arith.constant 0 : index
      %106 = vector.load %arg5[%c0_48, %c0_49] : memref<384x64xf32, #tpu.memory_space<vmem>>, vector<384x64xf32>
      %cst_50 = arith.constant dense<0.000000e+00> : vector<32x64xf32>
      %107 = tpu.matmul %105, %106, %cst_50 {dimension_numbers = #tpu.dot_dimension_numbers<[1], [0], [0], [1], [0, 0, 1, 1], [], []>} : vector<32x384xf32>, vector<384x64xf32>, vector<32x64xf32> -> vector<32x64xf32>
      %cst_51 = arith.constant 0.000000e+00 : f32
      %108 = vector.broadcast %cst_51 : f32 to vector<32x64xf32>
      %109 = arith.maximumf %107, %108 : vector<32x64xf32>
      %110 = arith.subf %69, %109 : vector<32x64xf32>
      %c1_i32_52 = arith.constant 1 : i32
      %111 = tpu.dynamic_rotate %110 by %c1_i32_52 dim 0 : vector<32x64xf32>, i32 -> vector<32x64xf32>
      %112 = arith.mulf %111, %21 : vector<32x64xf32>
      %c31_i32_53 = arith.constant 31 : i32
      %113 = tpu.dynamic_rotate %110 by %c31_i32_53 dim 0 : vector<32x64xf32>, i32 -> vector<32x64xf32>
      %114 = arith.mulf %113, %25 : vector<32x64xf32>
      %115 = tpu.concatenate %112, %110, %114 in 1 : vector<32x64xf32>, vector<32x64xf32>, vector<32x64xf32> -> vector<32x192xf32>
      %c0_54 = arith.constant 0 : index
      %c0_55 = arith.constant 0 : index
      %116 = vector.load %arg4[%c0_54, %c0_55] : memref<192x128xf32, #tpu.memory_space<vmem>>, vector<192x128xf32>
      %cst_56 = arith.constant dense<0.000000e+00> : vector<32x128xf32>
      %117 = tpu.matmul %115, %116, %cst_56 {dimension_numbers = #tpu.dot_dimension_numbers<[1], [0], [0], [1], [0, 0, 1, 1], [], []>} : vector<32x192xf32>, vector<192x128xf32>, vector<32x128xf32> -> vector<32x128xf32>
      %cst_57 = arith.constant 0.000000e+00 : f32
      %118 = vector.broadcast %cst_57 : f32 to vector<32x128xf32>
      %119 = arith.maximumf %117, %118 : vector<32x128xf32>
      %c1_i32_58 = arith.constant 1 : i32
      %120 = tpu.dynamic_rotate %119 by %c1_i32_58 dim 0 : vector<32x128xf32>, i32 -> vector<32x128xf32>
      %121 = arith.mulf %120, %46 : vector<32x128xf32>
      %c31_i32_59 = arith.constant 31 : i32
      %122 = tpu.dynamic_rotate %119 by %c31_i32_59 dim 0 : vector<32x128xf32>, i32 -> vector<32x128xf32>
      %123 = arith.mulf %122, %50 : vector<32x128xf32>
      %124 = tpu.concatenate %121, %119, %123 in 1 : vector<32x128xf32>, vector<32x128xf32>, vector<32x128xf32> -> vector<32x384xf32>
      %c0_60 = arith.constant 0 : index
      %c0_61 = arith.constant 0 : index
      %125 = vector.load %arg5[%c0_60, %c0_61] : memref<384x64xf32, #tpu.memory_space<vmem>>, vector<384x64xf32>
      %cst_62 = arith.constant dense<0.000000e+00> : vector<32x64xf32>
      %126 = tpu.matmul %124, %125, %cst_62 {dimension_numbers = #tpu.dot_dimension_numbers<[1], [0], [0], [1], [0, 0, 1, 1], [], []>} : vector<32x384xf32>, vector<384x64xf32>, vector<32x64xf32> -> vector<32x64xf32>
      %cst_63 = arith.constant 0.000000e+00 : f32
      %127 = vector.broadcast %cst_63 : f32 to vector<32x64xf32>
      %128 = arith.maximumf %126, %127 : vector<32x64xf32>
      %129 = arith.subf %69, %128 : vector<32x64xf32>
      %c1_i32_64 = arith.constant 1 : i32
      %130 = tpu.dynamic_rotate %129 by %c1_i32_64 dim 0 : vector<32x64xf32>, i32 -> vector<32x64xf32>
      %131 = arith.mulf %130, %21 : vector<32x64xf32>
      %c31_i32_65 = arith.constant 31 : i32
      %132 = tpu.dynamic_rotate %129 by %c31_i32_65 dim 0 : vector<32x64xf32>, i32 -> vector<32x64xf32>
      %133 = arith.mulf %132, %25 : vector<32x64xf32>
      %134 = tpu.concatenate %131, %129, %133 in 1 : vector<32x64xf32>, vector<32x64xf32>, vector<32x64xf32> -> vector<32x192xf32>
      %c0_66 = arith.constant 0 : index
      %c0_67 = arith.constant 0 : index
      %135 = vector.load %arg4[%c0_66, %c0_67] : memref<192x128xf32, #tpu.memory_space<vmem>>, vector<192x128xf32>
      %cst_68 = arith.constant dense<0.000000e+00> : vector<32x128xf32>
      %136 = tpu.matmul %134, %135, %cst_68 {dimension_numbers = #tpu.dot_dimension_numbers<[1], [0], [0], [1], [0, 0, 1, 1], [], []>} : vector<32x192xf32>, vector<192x128xf32>, vector<32x128xf32> -> vector<32x128xf32>
      %cst_69 = arith.constant 0.000000e+00 : f32
      %137 = vector.broadcast %cst_69 : f32 to vector<32x128xf32>
      %138 = arith.maximumf %136, %137 : vector<32x128xf32>
      %c1_i32_70 = arith.constant 1 : i32
      %139 = tpu.dynamic_rotate %138 by %c1_i32_70 dim 0 : vector<32x128xf32>, i32 -> vector<32x128xf32>
      %140 = arith.mulf %139, %46 : vector<32x128xf32>
      %c31_i32_71 = arith.constant 31 : i32
      %141 = tpu.dynamic_rotate %138 by %c31_i32_71 dim 0 : vector<32x128xf32>, i32 -> vector<32x128xf32>
      %142 = arith.mulf %141, %50 : vector<32x128xf32>
      %143 = tpu.concatenate %140, %138, %142 in 1 : vector<32x128xf32>, vector<32x128xf32>, vector<32x128xf32> -> vector<32x384xf32>
      %c0_72 = arith.constant 0 : index
      %c0_73 = arith.constant 0 : index
      %144 = vector.load %arg5[%c0_72, %c0_73] : memref<384x64xf32, #tpu.memory_space<vmem>>, vector<384x64xf32>
      %cst_74 = arith.constant dense<0.000000e+00> : vector<32x64xf32>
      %145 = tpu.matmul %143, %144, %cst_74 {dimension_numbers = #tpu.dot_dimension_numbers<[1], [0], [0], [1], [0, 0, 1, 1], [], []>} : vector<32x384xf32>, vector<384x64xf32>, vector<32x64xf32> -> vector<32x64xf32>
      %cst_75 = arith.constant 0.000000e+00 : f32
      %146 = vector.broadcast %cst_75 : f32 to vector<32x64xf32>
      %147 = arith.maximumf %145, %146 : vector<32x64xf32>
      %148 = arith.subf %69, %147 : vector<32x64xf32>
      scf.yield %148 : vector<32x64xf32>
    }
    %c0_26 = arith.constant 0 : index
    %c0_27 = arith.constant 0 : index
    %72 = vector.load %arg6[%c0_26, %c0_27] : memref<32x64xf32, #tpu.memory_space<vmem>>, vector<32x64xf32>
    tpu.vector_store %arg6[%c0_26, %c0_27], %71 {strides = array<i32>} : memref<32x64xf32, #tpu.memory_space<vmem>>, vector<32x64xf32>,
    return
  }
  func.func @transform_0(%arg0: i32) -> (i32, i32) {
    %c0_i32 = arith.constant 0 : i32
    %c0_i32_0 = arith.constant 0 : i32
    return %arg0, %c0_i32 : i32, i32
  }
  func.func @transform_1(%arg0: i32) -> (i32, i32) {
    %c0_i32 = arith.constant 0 : i32
    %c0_i32_0 = arith.constant 0 : i32
    %c0_i32_1 = arith.constant 0 : i32
    return %c0_i32, %c0_i32_0 : i32, i32
  }
  func.func @transform_2(%arg0: i32) -> (i32, i32) {
    %c0_i32 = arith.constant 0 : i32
    %c0_i32_0 = arith.constant 0 : i32
    %c0_i32_1 = arith.constant 0 : i32
    return %c0_i32, %c0_i32_0 : i32, i32
  }
  func.func @transform_3(%arg0: i32) -> (i32, i32) {
    %c0_i32 = arith.constant 0 : i32
    %c0_i32_0 = arith.constant 0 : i32
    %c0_i32_1 = arith.constant 0 : i32
    return %c0_i32, %c0_i32_0 : i32, i32
  }
  func.func @transform_4(%arg0: i32) -> (i32, i32) {
    %c0_i32 = arith.constant 0 : i32
    %c0_i32_0 = arith.constant 0 : i32
    %c0_i32_1 = arith.constant 0 : i32
    return %c0_i32, %c0_i32_0 : i32, i32
  }
  func.func @transform_5(%arg0: i32) -> (i32, i32) {
    %c0_i32 = arith.constant 0 : i32
    %c0_i32_0 = arith.constant 0 : i32
    return %arg0, %c0_i32 : i32, i32
  }
}

module attributes {stable_mosaic.version = 11 : i64} {
  func.func @_downsample_kernel(%arg0: memref<32x64xf32, #tpu.memory_space<vmem>>, %arg1: memref<64x128xf32, #tpu.memory_space<vmem>>, %arg2: memref<128x128xf32, #tpu.memory_space<vmem>>, %arg3: memref<1x128xf32, #tpu.memory_space<vmem>>, %arg4: memref<1x128xf32, #tpu.memory_space<vmem>>, %arg5: memref<32x128xf32, #tpu.memory_space<vmem>>) attributes {dimension_semantics = [], scalar_prefetch = 0 : i64, scratch_operands = 0 : i64, tpu.core_type = #tpu.core_type<tc>} {
    %c0 = arith.constant 0 : index
    %c0_0 = arith.constant 0 : index
    %0 = vector.load %arg0[%c0, %c0_0] : memref<32x64xf32, #tpu.memory_space<vmem>>, vector<32x64xf32>
    %c0_1 = arith.constant 0 : index
    %c0_2 = arith.constant 0 : index
    %1 = vector.load %arg1[%c0_1, %c0_2] : memref<64x128xf32, #tpu.memory_space<vmem>>, vector<64x128xf32>
    %cst = arith.constant dense<0.000000e+00> : vector<32x128xf32>
    %2 = tpu.matmul %0, %1, %cst {dimension_numbers = #tpu.dot_dimension_numbers<[1], [0], [0], [1], [0, 0, 1, 1], [], []>} : vector<32x64xf32>, vector<64x128xf32>, vector<32x128xf32> -> vector<32x128xf32>
    %cst_3 = arith.constant dense<0.000000e+00> : vector<128xf32>
    %3 = vector.multi_reduction <add>, %2, %cst_3 [0] : vector<32x128xf32> to vector<128xf32>
    %4 = vector.shape_cast %3 : vector<128xf32> to vector<1x128xf32>
    %c0_4 = arith.constant 0 : index
    %c0_5 = arith.constant 0 : index
    %5 = vector.load %arg2[%c0_4, %c0_5] : memref<128x128xf32, #tpu.memory_space<vmem>>, vector<128x128xf32>
    %cst_6 = arith.constant dense<0.000000e+00> : vector<1x128xf32>
    %6 = tpu.matmul %4, %5, %cst_6 {dimension_numbers = #tpu.dot_dimension_numbers<[1], [0], [0], [1], [0, 0, 1, 1], [], []>} : vector<1x128xf32>, vector<128x128xf32>, vector<1x128xf32> -> vector<1x128xf32>
    %7 = vector.broadcast %6 : vector<1x128xf32> to vector<32x128xf32>
    %8 = arith.subf %2, %7 : vector<32x128xf32>
    %9 = arith.mulf %8, %8 : vector<32x128xf32>
    %cst_7 = arith.constant dense<0.000000e+00> : vector<128xf32>
    %10 = vector.multi_reduction <add>, %9, %cst_7 [0] : vector<32x128xf32> to vector<128xf32>
    %11 = vector.shape_cast %10 : vector<128xf32> to vector<1x128xf32>
    %c0_8 = arith.constant 0 : index
    %c0_9 = arith.constant 0 : index
    %12 = vector.load %arg2[%c0_8, %c0_9] : memref<128x128xf32, #tpu.memory_space<vmem>>, vector<128x128xf32>
    %cst_10 = arith.constant dense<0.000000e+00> : vector<1x128xf32>
    %13 = tpu.matmul %11, %12, %cst_10 {dimension_numbers = #tpu.dot_dimension_numbers<[1], [0], [0], [1], [0, 0, 1, 1], [], []>} : vector<1x128xf32>, vector<128x128xf32>, vector<1x128xf32> -> vector<1x128xf32>
    %cst_11 = arith.constant 9.99999974E-6 : f32
    %14 = vector.broadcast %cst_11 : f32 to vector<1x128xf32>
    %15 = arith.addf %13, %14 : vector<1x128xf32>
    %16 = math.rsqrt %15 : vector<1x128xf32>
    %17 = vector.broadcast %16 : vector<1x128xf32> to vector<32x128xf32>
    %18 = arith.mulf %8, %17 : vector<32x128xf32>
    %c0_12 = arith.constant 0 : index
    %c0_13 = arith.constant 0 : index
    %19 = vector.load %arg3[%c0_12, %c0_13] : memref<1x128xf32, #tpu.memory_space<vmem>>, vector<1x128xf32>
    %20 = vector.broadcast %19 : vector<1x128xf32> to vector<32x128xf32>
    %21 = arith.mulf %18, %20 : vector<32x128xf32>
    %c0_14 = arith.constant 0 : index
    %c0_15 = arith.constant 0 : index
    %22 = vector.load %arg4[%c0_14, %c0_15] : memref<1x128xf32, #tpu.memory_space<vmem>>, vector<1x128xf32>
    %23 = vector.broadcast %22 : vector<1x128xf32> to vector<32x128xf32>
    %24 = arith.addf %21, %23 : vector<32x128xf32>
    %cst_16 = arith.constant 0.000000e+00 : f32
    %25 = vector.broadcast %cst_16 : f32 to vector<32x128xf32>
    %26 = arith.maximumf %24, %25 : vector<32x128xf32>
    %c0_17 = arith.constant 0 : index
    %c0_18 = arith.constant 0 : index
    %27 = vector.load %arg5[%c0_17, %c0_18] : memref<32x128xf32, #tpu.memory_space<vmem>>, vector<32x128xf32>
    tpu.vector_store %arg5[%c0_17, %c0_18], %26 {strides = array<i32>} : memref<32x128xf32, #tpu.memory_space<vmem>>, vector<32x128xf32>,
    return
  }
}

</mosaic_0001>

<llo_original>
// kernel: basic_implicit_block_forward.2
$region0: #{basic_implicit_block_forward.2}
  #allocation0 [shape = 'u32[]', space=smem, size = 0x4, offset = 0x4, fixed_abs, tag = 'smem constant byte address 0x4 - core index']
  #allocation1 [shape = 'u32[144,128]{1,0:T(1,128)}', space=vmem, size = 0x12000, scoped, tag = 'internal scratch']
  %s0 = inlined_call_operand.vmem [shape: f32[32,64], index: 0, kind: input, shape index: {}]
  %s1 = inlined_call_operand.vmem [shape: f32[192,128], index: 1, kind: input, shape index: {}]
  %s2 = inlined_call_operand.vmem [shape: f32[384,64], index: 2, kind: input, shape index: {}]
  %s3 = inlined_call_operand.vmem [shape: f32[192,128], index: 3, kind: input, shape index: {}]
  %s4 = inlined_call_operand.vmem [shape: f32[384,64], index: 4, kind: input, shape index: {}]
  %s5 = inlined_call_operand.vmem [shape: f32[32,64], index: 5, kind: output, shape index: {}]
  %s6 = sld [smem:[#allocation0]]
  $region37: #{basic_implicit_block_forward.2} parent=0
    _
  %s8 = ssub.s32 1, %s6
  %s9 = scalar_select 0, %s8, %s6
  // Predicated region
  $region2: #{basic_implicit_block_forward.2} parent=0 // pred_check
    _
  $region3: #{basic_implicit_block_forward.2} parent=0 // pred_check_branch
    %11 = sbr.rel (0) target = $region5
  $region4: #{basic_implicit_block_forward.2} parent=0 // pred_region
    _
  $region5: #{basic_implicit_block_forward.2} parent=0 // pred_fallthru
    _
  // Predicated region
  $region6: #{basic_implicit_block_forward.2} parent=0 // pred_check
    _
  $region7: #{basic_implicit_block_forward.2} parent=0 // pred_check_branch
    %13 = sbr.rel (0) target = $region9
  $region8: #{basic_implicit_block_forward.2} parent=0 // pred_region
    _
  $region9: #{basic_implicit_block_forward.2} parent=0 // pred_fallthru
    _
  // Predicated region
  $region10: #{basic_implicit_block_forward.2} parent=0 // pred_check
    _
  $region11: #{basic_implicit_block_forward.2} parent=0 // pred_check_branch
    %15 = sbr.rel (0) target = $region13
  $region12: #{basic_implicit_block_forward.2} parent=0 // pred_region
    _
  $region13: #{basic_implicit_block_forward.2} parent=0 // pred_fallthru
    _
  // Predicated region
  $region14: #{basic_implicit_block_forward.2} parent=0 // pred_check
    _
  $region15: #{basic_implicit_block_forward.2} parent=0 // pred_check_branch
    %17 = sbr.rel (0) target = $region17
  $region16: #{basic_implicit_block_forward.2} parent=0 // pred_region
    _
  $region17: #{basic_implicit_block_forward.2} parent=0 // pred_fallthru
    _
  // Predicated region
  $region18: #{basic_implicit_block_forward.2} parent=0 // pred_check
    _
  $region19: #{basic_implicit_block_forward.2} parent=0 // pred_check_branch
    %19 = sbr.rel (0) target = $region21
  $region20: #{basic_implicit_block_forward.2} parent=0 // pred_region
    _
  $region21: #{basic_implicit_block_forward.2} parent=0 // pred_fallthru
    _
  %v20 = vld [vmem:[%s0] sm:$0xff]
  %v21 = vld [vmem:[%s0 + $0x8] sm:$0xff]
  %v22 = vld [vmem:[%s0 + $0x10] sm:$0xff]
  %v23 = vld [vmem:[%s0 + $0x18] sm:$0xff]
  %v24 = vlaneseq
  %v25 = vshrl.u32 %v24, 7
  %v26 = vadd.s32 %v25, 8
  %v27 = vadd.s32 %v25, 16
  %v28 = vadd.s32 %v25, 24
  %vm29 = vcmp.lt.s32.totalorder %v25, 0
  %v30 = vsub.s32 0, %v25
  %v31 = vsel %vm29, %v30, %v25
  %v32 = vshrl.u32 %v31, 4
  %v33 = vand.u32 %v31, 15
  %v34 = vsub.s32 0, %v33
  %v35 = vsel %vm29, %v34, %v33
  %vm36 = vcmp.lt.s32.totalorder %v26, 0
  %v37 = vsub.s32 0, %v26
  %v38 = vsel %vm36, %v37, %v26
  %v39 = vshrl.u32 %v38, 4
  %v40 = vand.u32 %v38, 15
  %v41 = vsub.s32 0, %v40
  %v42 = vsel %vm36, %v41, %v40
  %vm43 = vcmp.lt.s32.totalorder %v27, 0
  %v44 = vsub.s32 0, %v27
  %v45 = vsel %vm43, %v44, %v27
  %v46 = vshrl.u32 %v45, 4
  %v47 = vand.u32 %v45, 15
  %v48 = vsub.s32 0, %v47
  %v49 = vsel %vm43, %v48, %v47
  %vm50 = vcmp.lt.s32.totalorder %v28, 0
  %v51 = vsub.s32 0, %v28
  %v52 = vsel %vm50, %v51, %v28
  %v53 = vshrl.u32 %v52, 4
  %v54 = vand.u32 %v52, 15
  %v55 = vsub.s32 0, %v54
  %v56 = vsel %vm50, %v55, %v54
  %vm57 = vcmp.ne.s32.totalorder %v35, 0
  %vm58 = vcmp.ne.s32.totalorder %v42, 0
  %vm59 = vcmp.ne.s32.totalorder %v49, 0
  %vm60 = vcmp.ne.s32.totalorder %v56, 0
  %vm61 = vcmp.lt.s32.totalorder %v35, 0
  %vm62 = vcmp.lt.s32.totalorder %v42, 0
  %vm63 = vcmp.lt.s32.totalorder %v49, 0
  %vm64 = vcmp.lt.s32.totalorder %v56, 0
  %vm65 = vmand %vm61, %vm57
  %vm66 = vmand %vm62, %vm58
  %vm67 = vmand %vm63, %vm59
  %vm68 = vmand %vm64, %vm60
  %v69 = vadd.s32 %v35, 16
  %v70 = vadd.s32 %v42, 16
  %v71 = vadd.s32 %v49, 16
  %v72 = vadd.s32 %v56, 16
  %v73 = vsel %vm65, %v69, %v35
  %v74 = vsel %vm66, %v70, %v42
  %v75 = vsel %vm67, %v71, %v49
  %v76 = vsel %vm68, %v72, %v56
  %vm77 = vcmp.ne.s32.totalorder %v73, 0
  %vm78 = vcmp.ne.s32.totalorder %v74, 0
  %vm79 = vcmp.ne.s32.totalorder %v75, 0
  %vm80 = vcmp.ne.s32.totalorder %v76, 0
  %v81 = vsel %vm77, 1, 0
  %v82 = vsel %vm78, 1, 0
  %v83 = vsel %vm79, 1, 0
  %v84 = vsel %vm80, 1, 0
  %v85 = vcvt.s32.f32 %v81
  %v86 = vcvt.s32.f32 %v82
  %v87 = vcvt.s32.f32 %v83
  %v88 = vcvt.s32.f32 %v84
  %vm89 = vcmp.ne.s32.totalorder %v73, 15
  %vm90 = vcmp.ne.s32.totalorder %v74, 15
  %vm91 = vcmp.ne.s32.totalorder %v75, 15
  %vm92 = vcmp.ne.s32.totalorder %v76, 15
  %v93 = vsel %vm89, 1, 0
  %v94 = vsel %vm90, 1, 0
  %v95 = vsel %vm91, 1, 0
  %v96 = vsel %vm92, 1, 0
  %v97 = vcvt.s32.f32 %v93
  %v98 = vcvt.s32.f32 %v94
  %v99 = vcvt.s32.f32 %v95
  %v100 = vcvt.s32.f32 %v96
  %v101 = vrot.slane %v20, 7
  %v102 = vrot.slane %v21, 7
  %v103 = vrot.slane %v22, 7
  %v104 = vrot.slane %v23, 7
  %vm105 = vcmp.lt.s32.totalorder %v25, 1
  %v106 = vsel %vm105, %v103, %v104
  %v107 = vsel %vm105, %v102, %v103
  %v108 = vsel %vm105, %v101, %v102
  %v109 = vsel %vm105, %v104, %v101
  %v110 = vmul.f32 %v109, %v85
  %v111 = vmul.f32 %v108, %v86
  %v112 = vmul.f32 %v107, %v87
  %v113 = vmul.f32 %v106, %v88
  %v114 = vrot.slane %v20, 1
  %v115 = vrot.slane %v21, 1
  %v116 = vrot.slane %v22, 1
  %v117 = vrot.slane %v23, 1
  %vm118 = vcmp.lt.s32.totalorder %v25, 7
  %v119 = vsel %vm118, %v116, %v117
  %v120 = vsel %vm118, %v115, %v116
  %v121 = vsel %vm118, %v114, %v115
  %v122 = vsel %vm118, %v117, %v114
  %v123 = vmul.f32 %v121, %v97
  %v124 = vmul.f32 %v120, %v98
  %v125 = vmul.f32 %v119, %v99
  %v126 = vmul.f32 %v122, %v100
  %131 = vrot.lane.b32.xlu0 %v20, 64
  %v132 = vpop.permute.xlu0 %131
  %133 = vrot.lane.b32.xlu0 %v21, 64
  %v134 = vpop.permute.xlu0 %133
  %135 = vrot.lane.b32.xlu0 %v22, 64
  %v136 = vpop.permute.xlu0 %135
  %137 = vrot.lane.b32.xlu0 %v23, 64
  %v138 = vpop.permute.xlu0 %137
  %vm143 = vcmask 523264
  %v144 = vsel %vm143, %v110, %v132
  %v145 = vsel %vm143, %v111, %v134
  %v146 = vsel %vm143, %v112, %v136
  %v147 = vsel %vm143, %v113, %v138
  %v148 = vld [vmem:[%s1] sm:$0xff]
  %v149 = vld [vmem:[%s1 + $0x8] sm:$0xff]
  %v150 = vld [vmem:[%s1 + $0x10] sm:$0xff]
  %v151 = vld [vmem:[%s1 + $0x18] sm:$0xff]
  %v152 = vld [vmem:[%s1 + $0x20] sm:$0xff]
  %v153 = vld [vmem:[%s1 + $0x28] sm:$0xff]
  %v154 = vld [vmem:[%s1 + $0x30] sm:$0xff]
  %v155 = vld [vmem:[%s1 + $0x38] sm:$0xff]
  %v156 = vld [vmem:[%s1 + $0x40] sm:$0xff]
  %v157 = vld [vmem:[%s1 + $0x48] sm:$0xff]
  %v158 = vld [vmem:[%s1 + $0x50] sm:$0xff]
  %v159 = vld [vmem:[%s1 + $0x58] sm:$0xff]
  %v160 = vld [vmem:[%s1 + $0x60] sm:$0xff]
  %v161 = vld [vmem:[%s1 + $0x68] sm:$0xff]
  %v162 = vld [vmem:[%s1 + $0x70] sm:$0xff]
  %v163 = vld [vmem:[%s1 + $0x78] sm:$0xff]
  %v164 = vld [vmem:[%s1 + $0x80] sm:$0xff]
  %v165 = vld [vmem:[%s1 + $0x88] sm:$0xff]
  %v166 = vld [vmem:[%s1 + $0x90] sm:$0xff]
  %v167 = vld [vmem:[%s1 + $0x98] sm:$0xff]
  %v168 = vld [vmem:[%s1 + $0xa0] sm:$0xff]
  %v169 = vld [vmem:[%s1 + $0xa8] sm:$0xff]
  %v170 = vld [vmem:[%s1 + $0xb0] sm:$0xff]
  %v171 = vld [vmem:[%s1 + $0xb8] sm:$0xff]
  %v173 = vsel %vm143, %v123, 0
  %v176 = vsel %vm143, %v124, 0
  %v179 = vsel %vm143, %v125, 0
  %v182 = vsel %vm143, %v126, 0
  %184 = vmatprep.subr.mxu0 0.0
  %185 = vmatpush1.msra.mxu0 %v148
  %186 = vmatprep.subr.mxu0 0.0
  %187 = vmatpush1.msra.mxu0 %v149
  %188 = vmatprep.subr.mxu0 0.0
  %189 = vmatpush1.msra.mxu0 %v150
  %190 = vmatprep.subr.mxu0 0.0
  %191 = vmatpush1.msra.mxu0 %v151
  %192 = vmatprep.subr.mxu0 0.0
  %193 = vmatpush1.msra.mxu0 %v152
  %194 = vmatprep.subr.mxu0 0.0
  %195 = vmatpush1.msra.mxu0 %v153
  %196 = vmatprep.subr.mxu0 0.0
  %197 = vmatpush1.msra.mxu0 %v154
  %198 = vmatprep.subr.mxu0 0.0
  %199 = vmatpush1.msra.mxu0 %v155
  %200 = vmatprep.subr.mxu0 0.0
  %201 = vmatpush1.msra.mxu0 %v156
  %202 = vmatprep.subr.mxu0 0.0
  %203 = vmatpush1.msra.mxu0 %v157
  %204 = vmatprep.subr.mxu0 0.0
  %205 = vmatpush1.msra.mxu0 %v158
  %206 = vmatprep.subr.mxu0 0.0
  %207 = vmatpush1.msra.mxu0 %v159
  %208 = vmatprep.subr.mxu0 0.0
  %209 = vmatpush1.msra.mxu0 %v160
  %210 = vmatprep.subr.mxu0 0.0
  %211 = vmatpush1.msra.mxu0 %v161
  %212 = vmatprep.subr.mxu0 0.0
  %213 = vmatpush1.msra.mxu0 %v162
  %214 = vmatprep.subr.mxu0 0.0
  %215 = vmatpush1.msra.mxu0 %v163
  %216 = vmatprep.subr.mxu0 0.0
  %217 = vmatpush1.msra.mxu0 %v164
  %218 = vmatprep.subr.mxu0 0.0
  %219 = vmatpush1.msra.mxu0 %v165
  %220 = vmatprep.subr.mxu0 0.0
  %221 = vmatpush1.msra.mxu0 %v166
  %222 = vmatprep.subr.mxu0 0.0
  %223 = vmatpush1.msra.mxu0 %v167
  %224 = vmatprep.subr.mxu0 0.0
  %225 = vmatpush1.msra.mxu0 %v168
  %226 = vmatprep.subr.mxu0 0.0
  %227 = vmatpush1.msra.mxu0 %v169
  %228 = vmatprep.subr.mxu0 0.0
  %229 = vmatpush1.msra.mxu0 %v170
  %230 = vmatprep.subr.mxu0 0.0
  %231 = vmatpush1.msra.mxu0 %v171
  %232 = vmatprep.subr.mxu0 0.0
  %233 = vmatpush1.msra.mxu0 0.0
  %234 = vmatprep.subr.mxu0 0.0
  %235 = vmatpush1.msra.mxu0 0.0
  %236 = vmatprep.subr.mxu0 0.0
  %237 = vmatpush1.msra.mxu0 0.0
  %238 = vmatprep.subr.mxu0 0.0
  %239 = vmatpush1.msra.mxu0 0.0
  %240 = vmatprep.subr.mxu0 0.0
  %241 = vmatpush1.msra.mxu0 0.0
  %242 = vmatprep.subr.mxu0 0.0
  %243 = vmatpush1.msra.mxu0 0.0
  %244 = vmatprep.subr.mxu0 0.0
  %245 = vmatpush1.msra.mxu0 0.0
  %246 = vmatprep.subr.mxu0 0.0
  %247 = vmatpush1.msra.mxu0 0.0
  %248 = vmatprep.mubr.f32.mxu0 %v173
  %249 = vmatmul.mubr.f32.gmra.mrb[0].mxu0 %v144
  %v250 = vpop.f32.mrb[0].mxu0
  %v251 = vadd.f32 0.0, %v250
  %v252 = vpop.f32.mrb[0].mxu0
  %253 = vmatprep.mubr.f32.mxu0 %v176
  %254 = vmatmul.mubr.f32.gmra.mrb[0].mxu0 %v145
  %v255 = vpop.f32.mrb[0].mxu0
  %v256 = vadd.f32 0.0, %v255
  %v257 = vpop.f32.mrb[0].mxu0
  %258 = vmatprep.mubr.f32.mxu0 %v179
  %259 = vmatmul.mubr.f32.gmra.mrb[0].mxu0 %v146
  %v260 = vpop.f32.mrb[0].mxu0
  %v261 = vadd.f32 0.0, %v260
  %v262 = vpop.f32.mrb[0].mxu0
  %263 = vmatprep.mubr.f32.mxu0 %v182
  %264 = vmatmul.mubr.f32.gmra.mrb[0].mxu0 %v147
  %v265 = vpop.f32.mrb[0].mxu0
  %v266 = vadd.f32 0.0, %v265
  %v267 = vpop.f32.mrb[0].mxu0
  %268 = vdwg.mxu0
  %v269 = vmax.f32 %v251, 0.0
  %v270 = vmax.f32 %v256, 0.0
  %v271 = vmax.f32 %v261, 0.0
  %v272 = vmax.f32 %v266, 0.0
  %v273 = vrot.slane %v269, 7
  %v274 = vrot.slane %v270, 7
  %v275 = vrot.slane %v271, 7
  %v276 = vrot.slane %v272, 7
  %v277 = vsel %vm105, %v275, %v276
  %v278 = vsel %vm105, %v274, %v275
  %v279 = vsel %vm105, %v273, %v274
  %v280 = vsel %vm105, %v276, %v273
  %v281 = vmul.f32 %v280, %v85
  %v282 = vmul.f32 %v279, %v86
  %v283 = vmul.f32 %v278, %v87
  %v284 = vmul.f32 %v277, %v88
  %v285 = vrot.slane %v269, 1
  %v286 = vrot.slane %v270, 1
  %v287 = vrot.slane %v271, 1
  %v288 = vrot.slane %v272, 1
  %v289 = vsel %vm118, %v287, %v288
  %v290 = vsel %vm118, %v286, %v287
  %v291 = vsel %vm118, %v285, %v286
  %v292 = vsel %vm118, %v288, %v285
  %v293 = vmul.f32 %v291, %v97
  %v294 = vmul.f32 %v290, %v98
  %v295 = vmul.f32 %v289, %v99
  %v296 = vmul.f32 %v292, %v100
  %v297 = vld [vmem:[%s2] sm:$0xff]
  %v298 = vld [vmem:[%s2 + $0x8] sm:$0xff]
  %v299 = vld [vmem:[%s2 + $0x10] sm:$0xff]
  %v300 = vld [vmem:[%s2 + $0x18] sm:$0xff]
  %v301 = vld [vmem:[%s2 + $0x20] sm:$0xff]
  %v302 = vld [vmem:[%s2 + $0x28] sm:$0xff]
  %v303 = vld [vmem:[%s2 + $0x30] sm:$0xff]
  %v304 = vld [vmem:[%s2 + $0x38] sm:$0xff]
  %v305 = vld [vmem:[%s2 + $0x40] sm:$0xff]
  %v306 = vld [vmem:[%s2 + $0x48] sm:$0xff]
  %v307 = vld [vmem:[%s2 + $0x50] sm:$0xff]
  %v308 = vld [vmem:[%s2 + $0x58] sm:$0xff]
  %v309 = vld [vmem:[%s2 + $0x60] sm:$0xff]
  %v310 = vld [vmem:[%s2 + $0x68] sm:$0xff]
  %v311 = vld [vmem:[%s2 + $0x70] sm:$0xff]
  %v312 = vld [vmem:[%s2 + $0x78] sm:$0xff]
  %v313 = vld [vmem:[%s2 + $0x80] sm:$0xff]
  %v314 = vld [vmem:[%s2 + $0x88] sm:$0xff]
  %v315 = vld [vmem:[%s2 + $0x90] sm:$0xff]
  %v316 = vld [vmem:[%s2 + $0x98] sm:$0xff]
  %v317 = vld [vmem:[%s2 + $0xa0] sm:$0xff]
  %v318 = vld [vmem:[%s2 + $0xa8] sm:$0xff]
  %v319 = vld [vmem:[%s2 + $0xb0] sm:$0xff]
  %v320 = vld [vmem:[%s2 + $0xb8] sm:$0xff]
  %v321 = vld [vmem:[%s2 + $0xc0] sm:$0xff]
  %v322 = vld [vmem:[%s2 + $0xc8] sm:$0xff]
  %v323 = vld [vmem:[%s2 + $0xd0] sm:$0xff]
  %v324 = vld [vmem:[%s2 + $0xd8] sm:$0xff]
  %v325 = vld [vmem:[%s2 + $0xe0] sm:$0xff]
  %v326 = vld [vmem:[%s2 + $0xe8] sm:$0xff]
  %v327 = vld [vmem:[%s2 + $0xf0] sm:$0xff]
  %v328 = vld [vmem:[%s2 + $0xf8] sm:$0xff]
  %v329 = vld [vmem:[%s2 + $0x100] sm:$0xff]
  %v330 = vld [vmem:[%s2 + $0x108] sm:$0xff]
  %v331 = vld [vmem:[%s2 + $0x110] sm:$0xff]
  %v332 = vld [vmem:[%s2 + $0x118] sm:$0xff]
  %v333 = vld [vmem:[%s2 + $0x120] sm:$0xff]
  %v334 = vld [vmem:[%s2 + $0x128] sm:$0xff]
  %v335 = vld [vmem:[%s2 + $0x130] sm:$0xff]
  %v336 = vld [vmem:[%s2 + $0x138] sm:$0xff]
  %v337 = vld [vmem:[%s2 + $0x140] sm:$0xff]
  %v338 = vld [vmem:[%s2 + $0x148] sm:$0xff]
  %v339 = vld [vmem:[%s2 + $0x150] sm:$0xff]
  %v340 = vld [vmem:[%s2 + $0x158] sm:$0xff]
  %v341 = vld [vmem:[%s2 + $0x160] sm:$0xff]
  %v342 = vld [vmem:[%s2 + $0x168] sm:$0xff]
  %v343 = vld [vmem:[%s2 + $0x170] sm:$0xff]
  %v344 = vld [vmem:[%s2 + $0x178] sm:$0xff]
  %345 = vmatprep.subr.mxu0 0.0
  %346 = vmatpush1.msra.mxu0 %v297
  %347 = vmatprep.subr.mxu0 0.0
  %348 = vmatpush1.msra.mxu0 %v298
  %349 = vmatprep.subr.mxu0 0.0
  %350 = vmatpush1.msra.mxu0 %v299
  %351 = vmatprep.subr.mxu0 0.0
  %352 = vmatpush1.msra.mxu0 %v300
  %353 = vmatprep.subr.mxu0 0.0
  %354 = vmatpush1.msra.mxu0 %v301
  %355 = vmatprep.subr.mxu0 0.0
  %356 = vmatpush1.msra.mxu0 %v302
  %357 = vmatprep.subr.mxu0 0.0
  %358 = vmatpush1.msra.mxu0 %v303
  %359 = vmatprep.subr.mxu0 0.0
  %360 = vmatpush1.msra.mxu0 %v304
  %361 = vmatprep.subr.mxu0 0.0
  %362 = vmatpush1.msra.mxu0 %v305
  %363 = vmatprep.subr.mxu0 0.0
  %364 = vmatpush1.msra.mxu0 %v306
  %365 = vmatprep.subr.mxu0 0.0
  %366 = vmatpush1.msra.mxu0 %v307
  %367 = vmatprep.subr.mxu0 0.0
  %368 = vmatpush1.msra.mxu0 %v308
  %369 = vmatprep.subr.mxu0 0.0
  %370 = vmatpush1.msra.mxu0 %v309
  %371 = vmatprep.subr.mxu0 0.0
  %372 = vmatpush1.msra.mxu0 %v310
  %373 = vmatprep.subr.mxu0 0.0
  %374 = vmatpush1.msra.mxu0 %v311
  %375 = vmatprep.subr.mxu0 0.0
  %376 = vmatpush1.msra.mxu0 %v312
  %377 = vmatprep.subr.mxu0 0.0
  %378 = vmatpush1.msra.mxu0 %v313
  %379 = vmatprep.subr.mxu0 0.0
  %380 = vmatpush1.msra.mxu0 %v314
  %381 = vmatprep.subr.mxu0 0.0
  %382 = vmatpush1.msra.mxu0 %v315
  %383 = vmatprep.subr.mxu0 0.0
  %384 = vmatpush1.msra.mxu0 %v316
  %385 = vmatprep.subr.mxu0 0.0
  %386 = vmatpush1.msra.mxu0 %v317
  %387 = vmatprep.subr.mxu0 0.0
  %388 = vmatpush1.msra.mxu0 %v318
  %389 = vmatprep.subr.mxu0 0.0
  %390 = vmatpush1.msra.mxu0 %v319
  %391 = vmatprep.subr.mxu0 0.0
  %392 = vmatpush1.msra.mxu0 %v320
  %393 = vmatprep.subr.mxu0 0.0
  %394 = vmatpush1.msra.mxu0 %v321
  %395 = vmatprep.subr.mxu0 0.0
  %396 = vmatpush1.msra.mxu0 %v322
  %397 = vmatprep.subr.mxu0 0.0
  %398 = vmatpush1.msra.mxu0 %v323
  %399 = vmatprep.subr.mxu0 0.0
  %400 = vmatpush1.msra.mxu0 %v324
  %401 = vmatprep.subr.mxu0 0.0
  %402 = vmatpush1.msra.mxu0 %v325
  %403 = vmatprep.subr.mxu0 0.0
  %404 = vmatpush1.msra.mxu0 %v326
  %405 = vmatprep.subr.mxu0 0.0
  %406 = vmatpush1.msra.mxu0 %v327
  %407 = vmatprep.subr.mxu0 0.0
  %408 = vmatpush1.msra.mxu0 %v328
  %409 = vmatprep.mubr.f32.mxu0 %v269
  %410 = vmatmul.mubr.f32.gmra.mrb[0].mxu0 %v281
  %v411 = vpop.f32.mrb[0].mxu0
  %v412 = vadd.f32 0.0, %v411
  %v413 = vpop.f32.mrb[0].mxu0
  %414 = vmatprep.mubr.f32.mxu0 %v270
  %415 = vmatmul.mubr.f32.gmra.mrb[0].mxu0 %v282
  %v416 = vpop.f32.mrb[0].mxu0
  %v417 = vadd.f32 0.0, %v416
  %v418 = vpop.f32.mrb[0].mxu0
  %419 = vmatprep.mubr.f32.mxu0 %v271
  %420 = vmatmul.mubr.f32.gmra.mrb[0].mxu0 %v283
  %v421 = vpop.f32.mrb[0].mxu0
  %v422 = vadd.f32 0.0, %v421
  %v423 = vpop.f32.mrb[0].mxu0
  %424 = vmatprep.mubr.f32.mxu0 %v272
  %425 = vmatmul.mubr.f32.gmra.mrb[0].mxu0 %v284
  %v426 = vpop.f32.mrb[0].mxu0
  %v427 = vadd.f32 0.0, %v426
  %v428 = vpop.f32.mrb[0].mxu0
  %429 = vdwg.mxu0
  %430 = vmatprep.subr.mxu0 0.0
  %431 = vmatpush1.msra.mxu0 %v329
  %432 = vmatprep.subr.mxu0 0.0
  %433 = vmatpush1.msra.mxu0 %v330
  %434 = vmatprep.subr.mxu0 0.0
  %435 = vmatpush1.msra.mxu0 %v331
  %436 = vmatprep.subr.mxu0 0.0
  %437 = vmatpush1.msra.mxu0 %v332
  %438 = vmatprep.subr.mxu0 0.0
  %439 = vmatpush1.msra.mxu0 %v333
  %440 = vmatprep.subr.mxu0 0.0
  %441 = vmatpush1.msra.mxu0 %v334
  %442 = vmatprep.subr.mxu0 0.0
  %443 = vmatpush1.msra.mxu0 %v335
  %444 = vmatprep.subr.mxu0 0.0
  %445 = vmatpush1.msra.mxu0 %v336
  %446 = vmatprep.subr.mxu0 0.0
  %447 = vmatpush1.msra.mxu0 %v337
  %448 = vmatprep.subr.mxu0 0.0
  %449 = vmatpush1.msra.mxu0 %v338
  %450 = vmatprep.subr.mxu0 0.0
  %451 = vmatpush1.msra.mxu0 %v339
  %452 = vmatprep.subr.mxu0 0.0
  %453 = vmatpush1.msra.mxu0 %v340
  %454 = vmatprep.subr.mxu0 0.0
  %455 = vmatpush1.msra.mxu0 %v341
  %456 = vmatprep.subr.mxu0 0.0
  %457 = vmatpush1.msra.mxu0 %v342
  %458 = vmatprep.subr.mxu0 0.0
  %459 = vmatpush1.msra.mxu0 %v343
  %460 = vmatprep.subr.mxu0 0.0
  %461 = vmatpush1.msra.mxu0 %v344
  %462 = vmatprep.subr.mxu0 0.0
  %463 = vmatpush1.msra.mxu0 0.0
  %464 = vmatprep.subr.mxu0 0.0
  %465 = vmatpush1.msra.mxu0 0.0
  %466 = vmatprep.subr.mxu0 0.0
  %467 = vmatpush1.msra.mxu0 0.0
  %468 = vmatprep.subr.mxu0 0.0
  %469 = vmatpush1.msra.mxu0 0.0
  %470 = vmatprep.subr.mxu0 0.0
  %471 = vmatpush1.msra.mxu0 0.0
  %472 = vmatprep.subr.mxu0 0.0
  %473 = vmatpush1.msra.mxu0 0.0
  %474 = vmatprep.subr.mxu0 0.0
  %475 = vmatpush1.msra.mxu0 0.0
  %476 = vmatprep.subr.mxu0 0.0
  %477 = vmatpush1.msra.mxu0 0.0
  %478 = vmatprep.subr.mxu0 0.0
  %479 = vmatpush1.msra.mxu0 0.0
  %480 = vmatprep.subr.mxu0 0.0
  %481 = vmatpush1.msra.mxu0 0.0
  %482 = vmatprep.subr.mxu0 0.0
  %483 = vmatpush1.msra.mxu0 0.0
  %484 = vmatprep.subr.mxu0 0.0
  %485 = vmatpush1.msra.mxu0 0.0
  %486 = vmatprep.subr.mxu0 0.0
  %487 = vmatpush1.msra.mxu0 0.0
  %488 = vmatprep.subr.mxu0 0.0
  %489 = vmatpush1.msra.mxu0 0.0
  %490 = vmatprep.subr.mxu0 0.0
  %491 = vmatpush1.msra.mxu0 0.0
  %492 = vmatprep.subr.mxu0 0.0
  %493 = vmatpush1.msra.mxu0 0.0
  %494 = vmatprep.mubr.f32.mxu0 0.0
  %495 = vmatmul.mubr.f32.gmra.mrb[0].mxu0 %v293
  %v496 = vpop.f32.mrb[0].mxu0
  %v497 = vadd.f32 %v412, %v496
  %v498 = vpop.f32.mrb[0].mxu0
  %499 = vmatprep.mubr.f32.mxu0 0.0
  %500 = vmatmul.mubr.f32.gmra.mrb[0].mxu0 %v294
  %v501 = vpop.f32.mrb[0].mxu0
  %v502 = vadd.f32 %v417, %v501
  %v503 = vpop.f32.mrb[0].mxu0
  %504 = vmatprep.mubr.f32.mxu0 0.0
  %505 = vmatmul.mubr.f32.gmra.mrb[0].mxu0 %v295
  %v506 = vpop.f32.mrb[0].mxu0
  %v507 = vadd.f32 %v422, %v506
  %v508 = vpop.f32.mrb[0].mxu0
  %509 = vmatprep.mubr.f32.mxu0 0.0
  %510 = vmatmul.mubr.f32.gmra.mrb[0].mxu0 %v296
  %v511 = vpop.f32.mrb[0].mxu0
  %v512 = vadd.f32 %v427, %v511
  %v513 = vpop.f32.mrb[0].mxu0
  %514 = vdwg.mxu0
  %v515 = vmax.f32 %v497, 0.0
  %v516 = vmax.f32 %v502, 0.0
  %v517 = vmax.f32 %v507, 0.0
  %v518 = vmax.f32 %v512, 0.0
  %v519 = vadd.f32 %v20, %v515
  %v520 = vadd.f32 %v21, %v516
  %v521 = vadd.f32 %v22, %v517
  %v522 = vadd.f32 %v23, %v518
  loop: start=0, step=1, limit=15
  $region22: #{basic_implicit_block_forward.2} parent=0 // loop_pre_header
    _
  $region23: #{basic_implicit_block_forward.2} parent=0 // loop_header
    %s524 = sphi 0, %s528
    %p525 = scmp.ge.s32.totalorder %s524, 15
    %v529 = vphi %v20, %v1989
    %v530 = vphi %v21, %v1990
    %v531 = vphi %v22, %v1991
    %v532 = vphi %v23, %v1992
  $region24: #{basic_implicit_block_forward.2} parent=0 // loop_header_branch
    %527 = sbr.rel (%p525) target = $region28
  $region25: #{basic_implicit_block_forward.2} parent=0 // loop_body
    %v533 = vrot.slane %v529, 7
    %v534 = vrot.slane %v530, 7
    %v535 = vrot.slane %v531, 7
    %v536 = vrot.slane %v532, 7
    %v537 = vsel %vm105, %v535, %v536
    %v538 = vsel %vm105, %v534, %v535
    %v539 = vsel %vm105, %v533, %v534
    %v540 = vsel %vm105, %v536, %v533
    %v541 = vmul.f32 %v540, %v85
    %v542 = vmul.f32 %v539, %v86
    %v543 = vmul.f32 %v538, %v87
    %v544 = vmul.f32 %v537, %v88
    %v545 = vrot.slane %v529, 1
    %v546 = vrot.slane %v530, 1
    %v547 = vrot.slane %v531, 1
    %v548 = vrot.slane %v532, 1
    %v549 = vsel %vm118, %v547, %v548
    %v550 = vsel %vm118, %v546, %v547
    %v551 = vsel %vm118, %v545, %v546
    %v552 = vsel %vm118, %v548, %v545
    %v553 = vmul.f32 %v551, %v97
    %v554 = vmul.f32 %v550, %v98
    %v555 = vmul.f32 %v549, %v99
    %v556 = vmul.f32 %v552, %v100
    %561 = vrot.lane.b32.xlu0 %v529, 64
    %v562 = vpop.permute.xlu0 %561
    %563 = vrot.lane.b32.xlu0 %v530, 64
    %v564 = vpop.permute.xlu0 %563
    %565 = vrot.lane.b32.xlu0 %v531, 64
    %v566 = vpop.permute.xlu0 %565
    %567 = vrot.lane.b32.xlu0 %v532, 64
    %v568 = vpop.permute.xlu0 %567
    %v573 = vsel %vm143, %v541, %v562
    %v574 = vsel %vm143, %v542, %v564
    %v575 = vsel %vm143, %v543, %v566
    %v576 = vsel %vm143, %v544, %v568
    %v577 = vld [vmem:[%s3] sm:$0xff]
    %v578 = vld [vmem:[%s3 + $0x8] sm:$0xff]
    %v579 = vld [vmem:[%s3 + $0x10] sm:$0xff]
    %v580 = vld [vmem:[%s3 + $0x18] sm:$0xff]
    %v581 = vld [vmem:[%s3 + $0x20] sm:$0xff]
    %v582 = vld [vmem:[%s3 + $0x28] sm:$0xff]
    %v583 = vld [vmem:[%s3 + $0x30] sm:$0xff]
    %v584 = vld [vmem:[%s3 + $0x38] sm:$0xff]
    %v585 = vld [vmem:[%s3 + $0x40] sm:$0xff]
    %v586 = vld [vmem:[%s3 + $0x48] sm:$0xff]
    %v587 = vld [vmem:[%s3 + $0x50] sm:$0xff]
    %v588 = vld [vmem:[%s3 + $0x58] sm:$0xff]
    %v589 = vld [vmem:[%s3 + $0x60] sm:$0xff]
    %v590 = vld [vmem:[%s3 + $0x68] sm:$0xff]
    %v591 = vld [vmem:[%s3 + $0x70] sm:$0xff]
    %v592 = vld [vmem:[%s3 + $0x78] sm:$0xff]
    %v593 = vld [vmem:[%s3 + $0x80] sm:$0xff]
    %v594 = vld [vmem:[%s3 + $0x88] sm:$0xff]
    %v595 = vld [vmem:[%s3 + $0x90] sm:$0xff]
    %v596 = vld [vmem:[%s3 + $0x98] sm:$0xff]
    %v597 = vld [vmem:[%s3 + $0xa0] sm:$0xff]
    %v598 = vld [vmem:[%s3 + $0xa8] sm:$0xff]
    %v599 = vld [vmem:[%s3 + $0xb0] sm:$0xff]
    %v600 = vld [vmem:[%s3 + $0xb8] sm:$0xff]
    %v602 = vsel %vm143, %v553, 0
    %v605 = vsel %vm143, %v554, 0
    %v608 = vsel %vm143, %v555, 0
    %v611 = vsel %vm143, %v556, 0
    %613 = vmatprep.subr.mxu0 0.0
    %614 = vmatpush1.msra.mxu0 %v577
    %615 = vmatprep.subr.mxu0 0.0
    %616 = vmatpush1.msra.mxu0 %v578
    %617 = vmatprep.subr.mxu0 0.0
    %618 = vmatpush1.msra.mxu0 %v579
    %619 = vmatprep.subr.mxu0 0.0
    %620 = vmatpush1.msra.mxu0 %v580
    %621 = vmatprep.subr.mxu0 0.0
    %622 = vmatpush1.msra.mxu0 %v581
    %623 = vmatprep.subr.mxu0 0.0
    %624 = vmatpush1.msra.mxu0 %v582
    %625 = vmatprep.subr.mxu0 0.0
    %626 = vmatpush1.msra.mxu0 %v583
    %627 = vmatprep.subr.mxu0 0.0
    %628 = vmatpush1.msra.mxu0 %v584
    %629 = vmatprep.subr.mxu0 0.0
    %630 = vmatpush1.msra.mxu0 %v585
    %631 = vmatprep.subr.mxu0 0.0
    %632 = vmatpush1.msra.mxu0 %v586
    %633 = vmatprep.subr.mxu0 0.0
    %634 = vmatpush1.msra.mxu0 %v587
    %635 = vmatprep.subr.mxu0 0.0
    %636 = vmatpush1.msra.mxu0 %v588
    %637 = vmatprep.subr.mxu0 0.0
    %638 = vmatpush1.msra.mxu0 %v589
    %639 = vmatprep.subr.mxu0 0.0
    %640 = vmatpush1.msra.mxu0 %v590
    %641 = vmatprep.subr.mxu0 0.0
    %642 = vmatpush1.msra.mxu0 %v591
    %643 = vmatprep.subr.mxu0 0.0
    %644 = vmatpush1.msra.mxu0 %v592
    %645 = vmatprep.subr.mxu0 0.0
    %646 = vmatpush1.msra.mxu0 %v593
    %647 = vmatprep.subr.mxu0 0.0
    %648 = vmatpush1.msra.mxu0 %v594
    %649 = vmatprep.subr.mxu0 0.0
    %650 = vmatpush1.msra.mxu0 %v595
    %651 = vmatprep.subr.mxu0 0.0
    %652 = vmatpush1.msra.mxu0 %v596
    %653 = vmatprep.subr.mxu0 0.0
    %654 = vmatpush1.msra.mxu0 %v597
    %655 = vmatprep.subr.mxu0 0.0
    %656 = vmatpush1.msra.mxu0 %v598
    %657 = vmatprep.subr.mxu0 0.0
    %658 = vmatpush1.msra.mxu0 %v599
    %659 = vmatprep.subr.mxu0 0.0
    %660 = vmatpush1.msra.mxu0 %v600
    %661 = vmatprep.subr.mxu0 0.0
    %662 = vmatpush1.msra.mxu0 0.0
    %663 = vmatprep.subr.mxu0 0.0
    %664 = vmatpush1.msra.mxu0 0.0
    %665 = vmatprep.subr.mxu0 0.0
    %666 = vmatpush1.msra.mxu0 0.0
    %667 = vmatprep.subr.mxu0 0.0
    %668 = vmatpush1.msra.mxu0 0.0
    %669 = vmatprep.subr.mxu0 0.0
    %670 = vmatpush1.msra.mxu0 0.0
    %671 = vmatprep.subr.mxu0 0.0
    %672 = vmatpush1.msra.mxu0 0.0
    %673 = vmatprep.subr.mxu0 0.0
    %674 = vmatpush1.msra.mxu0 0.0
    %675 = vmatprep.subr.mxu0 0.0
    %676 = vmatpush1.msra.mxu0 0.0
    %677 = vmatprep.mubr.f32.mxu0 %v602
    %678 = vmatmul.mubr.f32.gmra.mrb[0].mxu0 %v573
    %v679 = vpop.f32.mrb[0].mxu0
    %v680 = vadd.f32 0.0, %v679
    %v681 = vpop.f32.mrb[0].mxu0
    %682 = vmatprep.mubr.f32.mxu0 %v605
    %683 = vmatmul.mubr.f32.gmra.mrb[0].mxu0 %v574
    %v684 = vpop.f32.mrb[0].mxu0
    %v685 = vadd.f32 0.0, %v684
    %v686 = vpop.f32.mrb[0].mxu0
    %687 = vmatprep.mubr.f32.mxu0 %v608
    %688 = vmatmul.mubr.f32.gmra.mrb[0].mxu0 %v575
    %v689 = vpop.f32.mrb[0].mxu0
    %v690 = vadd.f32 0.0, %v689
    %v691 = vpop.f32.mrb[0].mxu0
    %692 = vmatprep.mubr.f32.mxu0 %v611
    %693 = vmatmul.mubr.f32.gmra.mrb[0].mxu0 %v576
    %v694 = vpop.f32.mrb[0].mxu0
    %v695 = vadd.f32 0.0, %v694
    %v696 = vpop.f32.mrb[0].mxu0
    %697 = vdwg.mxu0
    %v698 = vmax.f32 %v680, 0.0
    %v699 = vmax.f32 %v685, 0.0
    %v700 = vmax.f32 %v690, 0.0
    %v701 = vmax.f32 %v695, 0.0
    %v702 = vrot.slane %v698, 7
    %v703 = vrot.slane %v699, 7
    %v704 = vrot.slane %v700, 7
    %v705 = vrot.slane %v701, 7
    %v706 = vsel %vm105, %v704, %v705
    %v707 = vsel %vm105, %v703, %v704
    %v708 = vsel %vm105, %v702, %v703
    %v709 = vsel %vm105, %v705, %v702
    %v710 = vmul.f32 %v709, %v85
    %v711 = vmul.f32 %v708, %v86
    %v712 = vmul.f32 %v707, %v87
    %v713 = vmul.f32 %v706, %v88
    %v714 = vrot.slane %v698, 1
    %v715 = vrot.slane %v699, 1
    %v716 = vrot.slane %v700, 1
    %v717 = vrot.slane %v701, 1
    %v718 = vsel %vm118, %v716, %v717
    %v719 = vsel %vm118, %v715, %v716
    %v720 = vsel %vm118, %v714, %v715
    %v721 = vsel %vm118, %v717, %v714
    %v722 = vmul.f32 %v720, %v97
    %v723 = vmul.f32 %v719, %v98
    %v724 = vmul.f32 %v718, %v99
    %v725 = vmul.f32 %v721, %v100
    %v726 = vld [vmem:[%s4] sm:$0xff]
    %v727 = vld [vmem:[%s4 + $0x8] sm:$0xff]
    %v728 = vld [vmem:[%s4 + $0x10] sm:$0xff]
    %v729 = vld [vmem:[%s4 + $0x18] sm:$0xff]
    %v730 = vld [vmem:[%s4 + $0x20] sm:$0xff]
    %v731 = vld [vmem:[%s4 + $0x28] sm:$0xff]
    %v732 = vld [vmem:[%s4 + $0x30] sm:$0xff]
    %v733 = vld [vmem:[%s4 + $0x38] sm:$0xff]
    %v734 = vld [vmem:[%s4 + $0x40] sm:$0xff]
    %v735 = vld [vmem:[%s4 + $0x48] sm:$0xff]
    %v736 = vld [vmem:[%s4 + $0x50] sm:$0xff]
    %v737 = vld [vmem:[%s4 + $0x58] sm:$0xff]
    %v738 = vld [vmem:[%s4 + $0x60] sm:$0xff]
    %v739 = vld [vmem:[%s4 + $0x68] sm:$0xff]
    %v740 = vld [vmem:[%s4 + $0x70] sm:$0xff]
    %v741 = vld [vmem:[%s4 + $0x78] sm:$0xff]
    %v742 = vld [vmem:[%s4 + $0x80] sm:$0xff]
    %v743 = vld [vmem:[%s4 + $0x88] sm:$0xff]
    %v744 = vld [vmem:[%s4 + $0x90] sm:$0xff]
    %v745 = vld [vmem:[%s4 + $0x98] sm:$0xff]
    %v746 = vld [vmem:[%s4 + $0xa0] sm:$0xff]
    %v747 = vld [vmem:[%s4 + $0xa8] sm:$0xff]
    %v748 = vld [vmem:[%s4 + $0xb0] sm:$0xff]
    %v749 = vld [vmem:[%s4 + $0xb8] sm:$0xff]
    %v750 = vld [vmem:[%s4 + $0xc0] sm:$0xff]
    %v751 = vld [vmem:[%s4 + $0xc8] sm:$0xff]
    %v752 = vld [vmem:[%s4 + $0xd0] sm:$0xff]
    %v753 = vld [vmem:[%s4 + $0xd8] sm:$0xff]
    %v754 = vld [vmem:[%s4 + $0xe0] sm:$0xff]
    %v755 = vld [vmem:[%s4 + $0xe8] sm:$0xff]
    %v756 = vld [vmem:[%s4 + $0xf0] sm:$0xff]
    %v757 = vld [vmem:[%s4 + $0xf8] sm:$0xff]
    %v758 = vld [vmem:[%s4 + $0x100] sm:$0xff]
    %v759 = vld [vmem:[%s4 + $0x108] sm:$0xff]
    %v760 = vld [vmem:[%s4 + $0x110] sm:$0xff]
    %v761 = vld [vmem:[%s4 + $0x118] sm:$0xff]
    %v762 = vld [vmem:[%s4 + $0x120] sm:$0xff]
    %v763 = vld [vmem:[%s4 + $0x128] sm:$0xff]
    %v764 = vld [vmem:[%s4 + $0x130] sm:$0xff]
    %v765 = vld [vmem:[%s4 + $0x138] sm:$0xff]
    %v766 = vld [vmem:[%s4 + $0x140] sm:$0xff]
    %v767 = vld [vmem:[%s4 + $0x148] sm:$0xff]
    %v768 = vld [vmem:[%s4 + $0x150] sm:$0xff]
    %v769 = vld [vmem:[%s4 + $0x158] sm:$0xff]
    %v770 = vld [vmem:[%s4 + $0x160] sm:$0xff]
    %v771 = vld [vmem:[%s4 + $0x168] sm:$0xff]
    %v772 = vld [vmem:[%s4 + $0x170] sm:$0xff]
    %v773 = vld [vmem:[%s4 + $0x178] sm:$0xff]
    %774 = vmatprep.subr.mxu0 0.0
    %775 = vmatpush1.msra.mxu0 %v726
    %776 = vmatprep.subr.mxu0 0.0
    %777 = vmatpush1.msra.mxu0 %v727
    %778 = vmatprep.subr.mxu0 0.0
    %779 = vmatpush1.msra.mxu0 %v728
    %780 = vmatprep.subr.mxu0 0.0
    %781 = vmatpush1.msra.mxu0 %v729
    %782 = vmatprep.subr.mxu0 0.0
    %783 = vmatpush1.msra.mxu0 %v730
    %784 = vmatprep.subr.mxu0 0.0
    %785 = vmatpush1.msra.mxu0 %v731
    %786 = vmatprep.subr.mxu0 0.0
    %787 = vmatpush1.msra.mxu0 %v732
    %788 = vmatprep.subr.mxu0 0.0
    %789 = vmatpush1.msra.mxu0 %v733
    %790 = vmatprep.subr.mxu0 0.0
    %791 = vmatpush1.msra.mxu0 %v734
    %792 = vmatprep.subr.mxu0 0.0
    %793 = vmatpush1.msra.mxu0 %v735
    %794 = vmatprep.subr.mxu0 0.0
    %795 = vmatpush1.msra.mxu0 %v736
    %796 = vmatprep.subr.mxu0 0.0
    %797 = vmatpush1.msra.mxu0 %v737
    %798 = vmatprep.subr.mxu0 0.0
    %799 = vmatpush1.msra.mxu0 %v738
    %800 = vmatprep.subr.mxu0 0.0
    %801 = vmatpush1.msra.mxu0 %v739
    %802 = vmatprep.subr.mxu0 0.0
    %803 = vmatpush1.msra.mxu0 %v740
    %804 = vmatprep.subr.mxu0 0.0
    %805 = vmatpush1.msra.mxu0 %v741
    %806 = vmatprep.subr.mxu0 0.0
    %807 = vmatpush1.msra.mxu0 %v742
    %808 = vmatprep.subr.mxu0 0.0
    %809 = vmatpush1.msra.mxu0 %v743
    %810 = vmatprep.subr.mxu0 0.0
    %811 = vmatpush1.msra.mxu0 %v744
    %812 = vmatprep.subr.mxu0 0.0
    %813 = vmatpush1.msra.mxu0 %v745
    %814 = vmatprep.subr.mxu0 0.0
    %815 = vmatpush1.msra.mxu0 %v746
    %816 = vmatprep.subr.mxu0 0.0
    %817 = vmatpush1.msra.mxu0 %v747
    %818 = vmatprep.subr.mxu0 0.0
    %819 = vmatpush1.msra.mxu0 %v748
    %820 = vmatprep.subr.mxu0 0.0
    %821 = vmatpush1.msra.mxu0 %v749
    %822 = vmatprep.subr.mxu0 0.0
    %823 = vmatpush1.msra.mxu0 %v750
    %824 = vmatprep.subr.mxu0 0.0
    %825 = vmatpush1.msra.mxu0 %v751
    %826 = vmatprep.subr.mxu0 0.0
    %827 = vmatpush1.msra.mxu0 %v752
    %828 = vmatprep.subr.mxu0 0.0
    %829 = vmatpush1.msra.mxu0 %v753
    %830 = vmatprep.subr.mxu0 0.0
    %831 = vmatpush1.msra.mxu0 %v754
    %832 = vmatprep.subr.mxu0 0.0
    %833 = vmatpush1.msra.mxu0 %v755
    %834 = vmatprep.subr.mxu0 0.0
    %835 = vmatpush1.msra.mxu0 %v756
    %836 = vmatprep.subr.mxu0 0.0
    %837 = vmatpush1.msra.mxu0 %v757
    %838 = vmatprep.mubr.f32.mxu0 %v698
    %839 = vmatmul.mubr.f32.gmra.mrb[0].mxu0 %v710
    %v840 = vpop.f32.mrb[0].mxu0
    %v841 = vadd.f32 0.0, %v840
    %v842 = vpop.f32.mrb[0].mxu0
    %843 = vmatprep.mubr.f32.mxu0 %v699
    %844 = vmatmul.mubr.f32.gmra.mrb[0].mxu0 %v711
    %v845 = vpop.f32.mrb[0].mxu0
    %v846 = vadd.f32 0.0, %v845
    %v847 = vpop.f32.mrb[0].mxu0
    %848 = vmatprep.mubr.f32.mxu0 %v700
    %849 = vmatmul.mubr.f32.gmra.mrb[0].mxu0 %v712
    %v850 = vpop.f32.mrb[0].mxu0
    %v851 = vadd.f32 0.0, %v850
    %v852 = vpop.f32.mrb[0].mxu0
    %853 = vmatprep.mubr.f32.mxu0 %v701
    %854 = vmatmul.mubr.f32.gmra.mrb[0].mxu0 %v713
    %v855 = vpop.f32.mrb[0].mxu0
    %v856 = vadd.f32 0.0, %v855
    %v857 = vpop.f32.mrb[0].mxu0
    %858 = vdwg.mxu0
    %859 = vmatprep.subr.mxu0 0.0
    %860 = vmatpush1.msra.mxu0 %v758
    %861 = vmatprep.subr.mxu0 0.0
    %862 = vmatpush1.msra.mxu0 %v759
    %863 = vmatprep.subr.mxu0 0.0
    %864 = vmatpush1.msra.mxu0 %v760
    %865 = vmatprep.subr.mxu0 0.0
    %866 = vmatpush1.msra.mxu0 %v761
    %867 = vmatprep.subr.mxu0 0.0
    %868 = vmatpush1.msra.mxu0 %v762
    %869 = vmatprep.subr.mxu0 0.0
    %870 = vmatpush1.msra.mxu0 %v763
    %871 = vmatprep.subr.mxu0 0.0
    %872 = vmatpush1.msra.mxu0 %v764
    %873 = vmatprep.subr.mxu0 0.0
    %874 = vmatpush1.msra.mxu0 %v765
    %875 = vmatprep.subr.mxu0 0.0
    %876 = vmatpush1.msra.mxu0 %v766
    %877 = vmatprep.subr.mxu0 0.0
    %878 = vmatpush1.msra.mxu0 %v767
    %879 = vmatprep.subr.mxu0 0.0
    %880 = vmatpush1.msra.mxu0 %v768
    %881 = vmatprep.subr.mxu0 0.0
    %882 = vmatpush1.msra.mxu0 %v769
    %883 = vmatprep.subr.mxu0 0.0
    %884 = vmatpush1.msra.mxu0 %v770
    %885 = vmatprep.subr.mxu0 0.0
    %886 = vmatpush1.msra.mxu0 %v771
    %887 = vmatprep.subr.mxu0 0.0
    %888 = vmatpush1.msra.mxu0 %v772
    %889 = vmatprep.subr.mxu0 0.0
    %890 = vmatpush1.msra.mxu0 %v773
    %891 = vmatprep.subr.mxu0 0.0
    %892 = vmatpush1.msra.mxu0 0.0
    %893 = vmatprep.subr.mxu0 0.0
    %894 = vmatpush1.msra.mxu0 0.0
    %895 = vmatprep.subr.mxu0 0.0
    %896 = vmatpush1.msra.mxu0 0.0
    %897 = vmatprep.subr.mxu0 0.0
    %898 = vmatpush1.msra.mxu0 0.0
    %899 = vmatprep.subr.mxu0 0.0
    %900 = vmatpush1.msra.mxu0 0.0
    %901 = vmatprep.subr.mxu0 0.0
    %902 = vmatpush1.msra.mxu0 0.0
    %903 = vmatprep.subr.mxu0 0.0
    %904 = vmatpush1.msra.mxu0 0.0
    %905 = vmatprep.subr.mxu0 0.0
    %906 = vmatpush1.msra.mxu0 0.0
    %907 = vmatprep.subr.mxu0 0.0
    %908 = vmatpush1.msra.mxu0 0.0
    %909 = vmatprep.subr.mxu0 0.0
    %910 = vmatpush1.msra.mxu0 0.0
    %911 = vmatprep.subr.mxu0 0.0
    %912 = vmatpush1.msra.mxu0 0.0
    %913 = vmatprep.subr.mxu0 0.0
    %914 = vmatpush1.msra.mxu0 0.0
    %915 = vmatprep.subr.mxu0 0.0
    %916 = vmatpush1.msra.mxu0 0.0
    %917 = vmatprep.subr.mxu0 0.0
    %918 = vmatpush1.msra.mxu0 0.0
    %919 = vmatprep.subr.mxu0 0.0
    %920 = vmatpush1.msra.mxu0 0.0
    %921 = vmatprep.subr.mxu0 0.0
    %922 = vmatpush1.msra.mxu0 0.0
    %923 = vmatprep.mubr.f32.mxu0 0.0
    %924 = vmatmul.mubr.f32.gmra.mrb[0].mxu0 %v722
    %v925 = vpop.f32.mrb[0].mxu0
    %v926 = vadd.f32 %v841, %v925
    %v927 = vpop.f32.mrb[0].mxu0
    %928 = vmatprep.mubr.f32.mxu0 0.0
    %929 = vmatmul.mubr.f32.gmra.mrb[0].mxu0 %v723
    %v930 = vpop.f32.mrb[0].mxu0
    %v931 = vadd.f32 %v846, %v930
    %v932 = vpop.f32.mrb[0].mxu0
    %933 = vmatprep.mubr.f32.mxu0 0.0
    %934 = vmatmul.mubr.f32.gmra.mrb[0].mxu0 %v724
    %v935 = vpop.f32.mrb[0].mxu0
    %v936 = vadd.f32 %v851, %v935
    %v937 = vpop.f32.mrb[0].mxu0
    %938 = vmatprep.mubr.f32.mxu0 0.0
    %939 = vmatmul.mubr.f32.gmra.mrb[0].mxu0 %v725
    %v940 = vpop.f32.mrb[0].mxu0
    %v941 = vadd.f32 %v856, %v940
    %v942 = vpop.f32.mrb[0].mxu0
    %943 = vdwg.mxu0
    %v944 = vmax.f32 %v926, 0.0
    %v945 = vmax.f32 %v931, 0.0
    %v946 = vmax.f32 %v936, 0.0
    %v947 = vmax.f32 %v941, 0.0
    %v948 = vsub.f32 %v519, %v944
    %v949 = vsub.f32 %v520, %v945
    %v950 = vsub.f32 %v521, %v946
    %v951 = vsub.f32 %v522, %v947
    %v952 = vrot.slane %v948, 7
    %v953 = vrot.slane %v949, 7
    %v954 = vrot.slane %v950, 7
    %v955 = vrot.slane %v951, 7
    %v956 = vsel %vm105, %v954, %v955
    %v957 = vsel %vm105, %v953, %v954
    %v958 = vsel %vm105, %v952, %v953
    %v959 = vsel %vm105, %v955, %v952
    %v960 = vmul.f32 %v959, %v85
    %v961 = vmul.f32 %v958, %v86
    %v962 = vmul.f32 %v957, %v87
    %v963 = vmul.f32 %v956, %v88
    %v964 = vrot.slane %v948, 1
    %v965 = vrot.slane %v949, 1
    %v966 = vrot.slane %v950, 1
    %v967 = vrot.slane %v951, 1
    %v968 = vsel %vm118, %v966, %v967
    %v969 = vsel %vm118, %v965, %v966
    %v970 = vsel %vm118, %v964, %v965
    %v971 = vsel %vm118, %v967, %v964
    %v972 = vmul.f32 %v970, %v97
    %v973 = vmul.f32 %v969, %v98
    %v974 = vmul.f32 %v968, %v99
    %v975 = vmul.f32 %v971, %v100
    %980 = vrot.lane.b32.xlu0 %v948, 64
    %v981 = vpop.permute.xlu0 %980
    %982 = vrot.lane.b32.xlu0 %v949, 64
    %v983 = vpop.permute.xlu0 %982
    %984 = vrot.lane.b32.xlu0 %v950, 64
    %v985 = vpop.permute.xlu0 %984
    %986 = vrot.lane.b32.xlu0 %v951, 64
    %v987 = vpop.permute.xlu0 %986
    %v992 = vsel %vm143, %v960, %v981
    %v993 = vsel %vm143, %v961, %v983
    %v994 = vsel %vm143, %v962, %v985
    %v995 = vsel %vm143, %v963, %v987
    %v997 = vsel %vm143, %v972, 0
    %v1000 = vsel %vm143, %v973, 0
    %v1003 = vsel %vm143, %v974, 0
    %v1006 = vsel %vm143, %v975, 0
    %1008 = vmatprep.subr.mxu0 0.0
    %1009 = vmatpush1.msra.mxu0 %v577
    %1010 = vmatprep.subr.mxu0 0.0
    %1011 = vmatpush1.msra.mxu0 %v578
    %1012 = vmatprep.subr.mxu0 0.0
    %1013 = vmatpush1.msra.mxu0 %v579
    %1014 = vmatprep.subr.mxu0 0.0
    %1015 = vmatpush1.msra.mxu0 %v580
    %1016 = vmatprep.subr.mxu0 0.0
    %1017 = vmatpush1.msra.mxu0 %v581
    %1018 = vmatprep.subr.mxu0 0.0
    %1019 = vmatpush1.msra.mxu0 %v582
    %1020 = vmatprep.subr.mxu0 0.0
    %1021 = vmatpush1.msra.mxu0 %v583
    %1022 = vmatprep.subr.mxu0 0.0
    %1023 = vmatpush1.msra.mxu0 %v584
    %1024 = vmatprep.subr.mxu0 0.0
    %1025 = vmatpush1.msra.mxu0 %v585
    %1026 = vmatprep.subr.mxu0 0.0
    %1027 = vmatpush1.msra.mxu0 %v586
    %1028 = vmatprep.subr.mxu0 0.0
    %1029 = vmatpush1.msra.mxu0 %v587
    %1030 = vmatprep.subr.mxu0 0.0
    %1031 = vmatpush1.msra.mxu0 %v588
    %1032 = vmatprep.subr.mxu0 0.0
    %1033 = vmatpush1.msra.mxu0 %v589
    %1034 = vmatprep.subr.mxu0 0.0
    %1035 = vmatpush1.msra.mxu0 %v590
    %1036 = vmatprep.subr.mxu0 0.0
    %1037 = vmatpush1.msra.mxu0 %v591
    %1038 = vmatprep.subr.mxu0 0.0
    %1039 = vmatpush1.msra.mxu0 %v592
    %1040 = vmatprep.subr.mxu0 0.0
    %1041 = vmatpush1.msra.mxu0 %v593
    %1042 = vmatprep.subr.mxu0 0.0
    %1043 = vmatpush1.msra.mxu0 %v594
    %1044 = vmatprep.subr.mxu0 0.0
    %1045 = vmatpush1.msra.mxu0 %v595
    %1046 = vmatprep.subr.mxu0 0.0
    %1047 = vmatpush1.msra.mxu0 %v596
    %1048 = vmatprep.subr.mxu0 0.0
    %1049 = vmatpush1.msra.mxu0 %v597
    %1050 = vmatprep.subr.mxu0 0.0
    %1051 = vmatpush1.msra.mxu0 %v598
    %1052 = vmatprep.subr.mxu0 0.0
    %1053 = vmatpush1.msra.mxu0 %v599
    %1054 = vmatprep.subr.mxu0 0.0
    %1055 = vmatpush1.msra.mxu0 %v600
    %1056 = vmatprep.subr.mxu0 0.0
    %1057 = vmatpush1.msra.mxu0 0.0
    %1058 = vmatprep.subr.mxu0 0.0
    %1059 = vmatpush1.msra.mxu0 0.0
    %1060 = vmatprep.subr.mxu0 0.0
    %1061 = vmatpush1.msra.mxu0 0.0
    %1062 = vmatprep.subr.mxu0 0.0
    %1063 = vmatpush1.msra.mxu0 0.0
    %1064 = vmatprep.subr.mxu0 0.0
    %1065 = vmatpush1.msra.mxu0 0.0
    %1066 = vmatprep.subr.mxu0 0.0
    %1067 = vmatpush1.msra.mxu0 0.0
    %1068 = vmatprep.subr.mxu0 0.0
    %1069 = vmatpush1.msra.mxu0 0.0
    %1070 = vmatprep.subr.mxu0 0.0
    %1071 = vmatpush1.msra.mxu0 0.0
    %1072 = vmatprep.mubr.f32.mxu0 %v997
    %1073 = vmatmul.mubr.f32.gmra.mrb[0].mxu0 %v992
    %v1074 = vpop.f32.mrb[0].mxu0
    %v1075 = vadd.f32 0.0, %v1074
    %v1076 = vpop.f32.mrb[0].mxu0
    %1077 = vmatprep.mubr.f32.mxu0 %v1000
    %1078 = vmatmul.mubr.f32.gmra.mrb[0].mxu0 %v993
    %v1079 = vpop.f32.mrb[0].mxu0
    %v1080 = vadd.f32 0.0, %v1079
    %v1081 = vpop.f32.mrb[0].mxu0
    %1082 = vmatprep.mubr.f32.mxu0 %v1003
    %1083 = vmatmul.mubr.f32.gmra.mrb[0].mxu0 %v994
    %v1084 = vpop.f32.mrb[0].mxu0
    %v1085 = vadd.f32 0.0, %v1084
    %v1086 = vpop.f32.mrb[0].mxu0
    %1087 = vmatprep.mubr.f32.mxu0 %v1006
    %1088 = vmatmul.mubr.f32.gmra.mrb[0].mxu0 %v995
    %v1089 = vpop.f32.mrb[0].mxu0
    %v1090 = vadd.f32 0.0, %v1089
    %v1091 = vpop.f32.mrb[0].mxu0
    %1092 = vdwg.mxu0
    %v1093 = vmax.f32 %v1075, 0.0
    %v1094 = vmax.f32 %v1080, 0.0
    %v1095 = vmax.f32 %v1085, 0.0
    %v1096 = vmax.f32 %v1090, 0.0
    %v1097 = vrot.slane %v1093, 7
    %v1098 = vrot.slane %v1094, 7
    %v1099 = vrot.slane %v1095, 7
    %v1100 = vrot.slane %v1096, 7
    %v1101 = vsel %vm105, %v1099, %v1100
    %v1102 = vsel %vm105, %v1098, %v1099
    %v1103 = vsel %vm105, %v1097, %v1098
    %v1104 = vsel %vm105, %v1100, %v1097
    %v1105 = vmul.f32 %v1104, %v85
    %v1106 = vmul.f32 %v1103, %v86
    %v1107 = vmul.f32 %v1102, %v87
    %v1108 = vmul.f32 %v1101, %v88
    %v1109 = vrot.slane %v1093, 1
    %v1110 = vrot.slane %v1094, 1
    %v1111 = vrot.slane %v1095, 1
    %v1112 = vrot.slane %v1096, 1
    %v1113 = vsel %vm118, %v1111, %v1112
    %v1114 = vsel %vm118, %v1110, %v1111
    %v1115 = vsel %vm118, %v1109, %v1110
    %v1116 = vsel %vm118, %v1112, %v1109
    %v1117 = vmul.f32 %v1115, %v97
    %v1118 = vmul.f32 %v1114, %v98
    %v1119 = vmul.f32 %v1113, %v99
    %v1120 = vmul.f32 %v1116, %v100
    %1121 = vmatprep.subr.mxu0 0.0
    %1122 = vmatpush1.msra.mxu0 %v726
    %1123 = vmatprep.subr.mxu0 0.0
    %1124 = vmatpush1.msra.mxu0 %v727
    %1125 = vmatprep.subr.mxu0 0.0
    %1126 = vmatpush1.msra.mxu0 %v728
    %1127 = vmatprep.subr.mxu0 0.0
    %1128 = vmatpush1.msra.mxu0 %v729
    %1129 = vmatprep.subr.mxu0 0.0
    %1130 = vmatpush1.msra.mxu0 %v730
    %1131 = vmatprep.subr.mxu0 0.0
    %1132 = vmatpush1.msra.mxu0 %v731
    %1133 = vmatprep.subr.mxu0 0.0
    %1134 = vmatpush1.msra.mxu0 %v732
    %1135 = vmatprep.subr.mxu0 0.0
    %1136 = vmatpush1.msra.mxu0 %v733
    %1137 = vmatprep.subr.mxu0 0.0
    %1138 = vmatpush1.msra.mxu0 %v734
    %1139 = vmatprep.subr.mxu0 0.0
    %1140 = vmatpush1.msra.mxu0 %v735
    %1141 = vmatprep.subr.mxu0 0.0
    %1142 = vmatpush1.msra.mxu0 %v736
    %1143 = vmatprep.subr.mxu0 0.0
    %1144 = vmatpush1.msra.mxu0 %v737
    %1145 = vmatprep.subr.mxu0 0.0
    %1146 = vmatpush1.msra.mxu0 %v738
    %1147 = vmatprep.subr.mxu0 0.0
    %1148 = vmatpush1.msra.mxu0 %v739
    %1149 = vmatprep.subr.mxu0 0.0
    %1150 = vmatpush1.msra.mxu0 %v740
    %1151 = vmatprep.subr.mxu0 0.0
    %1152 = vmatpush1.msra.mxu0 %v741
    %1153 = vmatprep.subr.mxu0 0.0
    %1154 = vmatpush1.msra.mxu0 %v742
    %1155 = vmatprep.subr.mxu0 0.0
    %1156 = vmatpush1.msra.mxu0 %v743
    %1157 = vmatprep.subr.mxu0 0.0
    %1158 = vmatpush1.msra.mxu0 %v744
    %1159 = vmatprep.subr.mxu0 0.0
    %1160 = vmatpush1.msra.mxu0 %v745
    %1161 = vmatprep.subr.mxu0 0.0
    %1162 = vmatpush1.msra.mxu0 %v746
    %1163 = vmatprep.subr.mxu0 0.0
    %1164 = vmatpush1.msra.mxu0 %v747
    %1165 = vmatprep.subr.mxu0 0.0
    %1166 = vmatpush1.msra.mxu0 %v748
    %1167 = vmatprep.subr.mxu0 0.0
    %1168 = vmatpush1.msra.mxu0 %v749
    %1169 = vmatprep.subr.mxu0 0.0
    %1170 = vmatpush1.msra.mxu0 %v750
    %1171 = vmatprep.subr.mxu0 0.0
    %1172 = vmatpush1.msra.mxu0 %v751
    %1173 = vmatprep.subr.mxu0 0.0
    %1174 = vmatpush1.msra.mxu0 %v752
    %1175 = vmatprep.subr.mxu0 0.0
    %1176 = vmatpush1.msra.mxu0 %v753
    %1177 = vmatprep.subr.mxu0 0.0
    %1178 = vmatpush1.msra.mxu0 %v754
    %1179 = vmatprep.subr.mxu0 0.0
    %1180 = vmatpush1.msra.mxu0 %v755
    %1181 = vmatprep.subr.mxu0 0.0
    %1182 = vmatpush1.msra.mxu0 %v756
    %1183 = vmatprep.subr.mxu0 0.0
    %1184 = vmatpush1.msra.mxu0 %v757
    %1185 = vmatprep.mubr.f32.mxu0 %v1093
    %1186 = vmatmul.mubr.f32.gmra.mrb[0].mxu0 %v1105
    %v1187 = vpop.f32.mrb[0].mxu0
    %v1188 = vadd.f32 0.0, %v1187
    %v1189 = vpop.f32.mrb[0].mxu0
    %1190 = vmatprep.mubr.f32.mxu0 %v1094
    %1191 = vmatmul.mubr.f32.gmra.mrb[0].mxu0 %v1106
    %v1192 = vpop.f32.mrb[0].mxu0
    %v1193 = vadd.f32 0.0, %v1192
    %v1194 = vpop.f32.mrb[0].mxu0
    %1195 = vmatprep.mubr.f32.mxu0 %v1095
    %1196 = vmatmul.mubr.f32.gmra.mrb[0].mxu0 %v1107
    %v1197 = vpop.f32.mrb[0].mxu0
    %v1198 = vadd.f32 0.0, %v1197
    %v1199 = vpop.f32.mrb[0].mxu0
    %1200 = vmatprep.mubr.f32.mxu0 %v1096
    %1201 = vmatmul.mubr.f32.gmra.mrb[0].mxu0 %v1108
    %v1202 = vpop.f32.mrb[0].mxu0
    %v1203 = vadd.f32 0.0, %v1202
    %v1204 = vpop.f32.mrb[0].mxu0
    %1205 = vdwg.mxu0
    %1206 = vmatprep.subr.mxu0 0.0
    %1207 = vmatpush1.msra.mxu0 %v758
    %1208 = vmatprep.subr.mxu0 0.0
    %1209 = vmatpush1.msra.mxu0 %v759
    %1210 = vmatprep.subr.mxu0 0.0
    %1211 = vmatpush1.msra.mxu0 %v760
    %1212 = vmatprep.subr.mxu0 0.0
    %1213 = vmatpush1.msra.mxu0 %v761
    %1214 = vmatprep.subr.mxu0 0.0
    %1215 = vmatpush1.msra.mxu0 %v762
    %1216 = vmatprep.subr.mxu0 0.0
    %1217 = vmatpush1.msra.mxu0 %v763
    %1218 = vmatprep.subr.mxu0 0.0
    %1219 = vmatpush1.msra.mxu0 %v764
    %1220 = vmatprep.subr.mxu0 0.0
    %1221 = vmatpush1.msra.mxu0 %v765
    %1222 = vmatprep.subr.mxu0 0.0
    %1223 = vmatpush1.msra.mxu0 %v766
    %1224 = vmatprep.subr.mxu0 0.0
    %1225 = vmatpush1.msra.mxu0 %v767
    %1226 = vmatprep.subr.mxu0 0.0
    %1227 = vmatpush1.msra.mxu0 %v768
    %1228 = vmatprep.subr.mxu0 0.0
    %1229 = vmatpush1.msra.mxu0 %v769
    %1230 = vmatprep.subr.mxu0 0.0
    %1231 = vmatpush1.msra.mxu0 %v770
    %1232 = vmatprep.subr.mxu0 0.0
    %1233 = vmatpush1.msra.mxu0 %v771
    %1234 = vmatprep.subr.mxu0 0.0
    %1235 = vmatpush1.msra.mxu0 %v772
    %1236 = vmatprep.subr.mxu0 0.0
    %1237 = vmatpush1.msra.mxu0 %v773
    %1238 = vmatprep.subr.mxu0 0.0
    %1239 = vmatpush1.msra.mxu0 0.0
    %1240 = vmatprep.subr.mxu0 0.0
    %1241 = vmatpush1.msra.mxu0 0.0
    %1242 = vmatprep.subr.mxu0 0.0
    %1243 = vmatpush1.msra.mxu0 0.0
    %1244 = vmatprep.subr.mxu0 0.0
    %1245 = vmatpush1.msra.mxu0 0.0
    %1246 = vmatprep.subr.mxu0 0.0
    %1247 = vmatpush1.msra.mxu0 0.0
    %1248 = vmatprep.subr.mxu0 0.0
    %1249 = vmatpush1.msra.mxu0 0.0
    %1250 = vmatprep.subr.mxu0 0.0
    %1251 = vmatpush1.msra.mxu0 0.0
    %1252 = vmatprep.subr.mxu0 0.0
    %1253 = vmatpush1.msra.mxu0 0.0
    %1254 = vmatprep.subr.mxu0 0.0
    %1255 = vmatpush1.msra.mxu0 0.0
    %1256 = vmatprep.subr.mxu0 0.0
    %1257 = vmatpush1.msra.mxu0 0.0
    %1258 = vmatprep.subr.mxu0 0.0
    %1259 = vmatpush1.msra.mxu0 0.0
    %1260 = vmatprep.subr.mxu0 0.0
    %1261 = vmatpush1.msra.mxu0 0.0
    %1262 = vmatprep.subr.mxu0 0.0
    %1263 = vmatpush1.msra.mxu0 0.0
    %1264 = vmatprep.subr.mxu0 0.0
    %1265 = vmatpush1.msra.mxu0 0.0
    %1266 = vmatprep.subr.mxu0 0.0
    %1267 = vmatpush1.msra.mxu0 0.0
    %1268 = vmatprep.subr.mxu0 0.0
    %1269 = vmatpush1.msra.mxu0 0.0
    %1270 = vmatprep.mubr.f32.mxu0 0.0
    %1271 = vmatmul.mubr.f32.gmra.mrb[0].mxu0 %v1117
    %v1272 = vpop.f32.mrb[0].mxu0
    %v1273 = vadd.f32 %v1188, %v1272
    %v1274 = vpop.f32.mrb[0].mxu0
    %1275 = vmatprep.mubr.f32.mxu0 0.0
    %1276 = vmatmul.mubr.f32.gmra.mrb[0].mxu0 %v1118
    %v1277 = vpop.f32.mrb[0].mxu0
    %v1278 = vadd.f32 %v1193, %v1277
    %v1279 = vpop.f32.mrb[0].mxu0
    %1280 = vmatprep.mubr.f32.mxu0 0.0
    %1281 = vmatmul.mubr.f32.gmra.mrb[0].mxu0 %v1119
    %v1282 = vpop.f32.mrb[0].mxu0
    %v1283 = vadd.f32 %v1198, %v1282
    %v1284 = vpop.f32.mrb[0].mxu0
    %1285 = vmatprep.mubr.f32.mxu0 0.0
    %1286 = vmatmul.mubr.f32.gmra.mrb[0].mxu0 %v1120
    %v1287 = vpop.f32.mrb[0].mxu0
    %v1288 = vadd.f32 %v1203, %v1287
    %v1289 = vpop.f32.mrb[0].mxu0
    %1290 = vdwg.mxu0
    %v1291 = vmax.f32 %v1273, 0.0
    %v1292 = vmax.f32 %v1278, 0.0
    %v1293 = vmax.f32 %v1283, 0.0
    %v1294 = vmax.f32 %v1288, 0.0
    %v1295 = vsub.f32 %v519, %v1291
    %v1296 = vsub.f32 %v520, %v1292
    %v1297 = vsub.f32 %v521, %v1293
    %v1298 = vsub.f32 %v522, %v1294
    %v1299 = vrot.slane %v1295, 7
    %v1300 = vrot.slane %v1296, 7
    %v1301 = vrot.slane %v1297, 7
    %v1302 = vrot.slane %v1298, 7
    %v1303 = vsel %vm105, %v1301, %v1302
    %v1304 = vsel %vm105, %v1300, %v1301
    %v1305 = vsel %vm105, %v1299, %v1300
    %v1306 = vsel %vm105, %v1302, %v1299
    %v1307 = vmul.f32 %v1306, %v85
    %v1308 = vmul.f32 %v1305, %v86
    %v1309 = vmul.f32 %v1304, %v87
    %v1310 = vmul.f32 %v1303, %v88
    %v1311 = vrot.slane %v1295, 1
    %v1312 = vrot.slane %v1296, 1
    %v1313 = vrot.slane %v1297, 1
    %v1314 = vrot.slane %v1298, 1
    %v1315 = vsel %vm118, %v1313, %v1314
    %v1316 = vsel %vm118, %v1312, %v1313
    %v1317 = vsel %vm118, %v1311, %v1312
    %v1318 = vsel %vm118, %v1314, %v1311
    %v1319 = vmul.f32 %v1317, %v97
    %v1320 = vmul.f32 %v1316, %v98
    %v1321 = vmul.f32 %v1315, %v99
    %v1322 = vmul.f32 %v1318, %v100
    %1327 = vrot.lane.b32.xlu0 %v1295, 64
    %v1328 = vpop.permute.xlu0 %1327
    %1329 = vrot.lane.b32.xlu0 %v1296, 64
    %v1330 = vpop.permute.xlu0 %1329
    %1331 = vrot.lane.b32.xlu0 %v1297, 64
    %v1332 = vpop.permute.xlu0 %1331
    %1333 = vrot.lane.b32.xlu0 %v1298, 64
    %v1334 = vpop.permute.xlu0 %1333
    %v1339 = vsel %vm143, %v1307, %v1328
    %v1340 = vsel %vm143, %v1308, %v1330
    %v1341 = vsel %vm143, %v1309, %v1332
    %v1342 = vsel %vm143, %v1310, %v1334
    %v1344 = vsel %vm143, %v1319, 0
    %v1347 = vsel %vm143, %v1320, 0
    %v1350 = vsel %vm143, %v1321, 0
    %v1353 = vsel %vm143, %v1322, 0
    %1355 = vmatprep.subr.mxu0 0.0
    %1356 = vmatpush1.msra.mxu0 %v577
    %1357 = vmatprep.subr.mxu0 0.0
    %1358 = vmatpush1.msra.mxu0 %v578
    %1359 = vmatprep.subr.mxu0 0.0
    %1360 = vmatpush1.msra.mxu0 %v579
    %1361 = vmatprep.subr.mxu0 0.0
    %1362 = vmatpush1.msra.mxu0 %v580
    %1363 = vmatprep.subr.mxu0 0.0
    %1364 = vmatpush1.msra.mxu0 %v581
    %1365 = vmatprep.subr.mxu0 0.0
    %1366 = vmatpush1.msra.mxu0 %v582
    %1367 = vmatprep.subr.mxu0 0.0
    %1368 = vmatpush1.msra.mxu0 %v583
    %1369 = vmatprep.subr.mxu0 0.0
    %1370 = vmatpush1.msra.mxu0 %v584
    %1371 = vmatprep.subr.mxu0 0.0
    %1372 = vmatpush1.msra.mxu0 %v585
    %1373 = vmatprep.subr.mxu0 0.0
    %1374 = vmatpush1.msra.mxu0 %v586
    %1375 = vmatprep.subr.mxu0 0.0
    %1376 = vmatpush1.msra.mxu0 %v587
    %1377 = vmatprep.subr.mxu0 0.0
    %1378 = vmatpush1.msra.mxu0 %v588
    %1379 = vmatprep.subr.mxu0 0.0
    %1380 = vmatpush1.msra.mxu0 %v589
    %1381 = vmatprep.subr.mxu0 0.0
    %1382 = vmatpush1.msra.mxu0 %v590
    %1383 = vmatprep.subr.mxu0 0.0
    %1384 = vmatpush1.msra.mxu0 %v591
    %1385 = vmatprep.subr.mxu0 0.0
    %1386 = vmatpush1.msra.mxu0 %v592
    %1387 = vmatprep.subr.mxu0 0.0
    %1388 = vmatpush1.msra.mxu0 %v593
    %1389 = vmatprep.subr.mxu0 0.0
    %1390 = vmatpush1.msra.mxu0 %v594
    %1391 = vmatprep.subr.mxu0 0.0
    %1392 = vmatpush1.msra.mxu0 %v595
    %1393 = vmatprep.subr.mxu0 0.0
    %1394 = vmatpush1.msra.mxu0 %v596
    %1395 = vmatprep.subr.mxu0 0.0
    %1396 = vmatpush1.msra.mxu0 %v597
    %1397 = vmatprep.subr.mxu0 0.0
    %1398 = vmatpush1.msra.mxu0 %v598
    %1399 = vmatprep.subr.mxu0 0.0
    %1400 = vmatpush1.msra.mxu0 %v599
    %1401 = vmatprep.subr.mxu0 0.0
    %1402 = vmatpush1.msra.mxu0 %v600
    %1403 = vmatprep.subr.mxu0 0.0
    %1404 = vmatpush1.msra.mxu0 0.0
    %1405 = vmatprep.subr.mxu0 0.0
    %1406 = vmatpush1.msra.mxu0 0.0
    %1407 = vmatprep.subr.mxu0 0.0
    %1408 = vmatpush1.msra.mxu0 0.0
    %1409 = vmatprep.subr.mxu0 0.0
    %1410 = vmatpush1.msra.mxu0 0.0
    %1411 = vmatprep.subr.mxu0 0.0
    %1412 = vmatpush1.msra.mxu0 0.0
    %1413 = vmatprep.subr.mxu0 0.0
    %1414 = vmatpush1.msra.mxu0 0.0
    %1415 = vmatprep.subr.mxu0 0.0
    %1416 = vmatpush1.msra.mxu0 0.0
    %1417 = vmatprep.subr.mxu0 0.0
    %1418 = vmatpush1.msra.mxu0 0.0
    %1419 = vmatprep.mubr.f32.mxu0 %v1344
    %1420 = vmatmul.mubr.f32.gmra.mrb[0].mxu0 %v1339
    %v1421 = vpop.f32.mrb[0].mxu0
    %v1422 = vadd.f32 0.0, %v1421
    %v1423 = vpop.f32.mrb[0].mxu0
    %1424 = vmatprep.mubr.f32.mxu0 %v1347
    %1425 = vmatmul.mubr.f32.gmra.mrb[0].mxu0 %v1340
    %v1426 = vpop.f32.mrb[0].mxu0
    %v1427 = vadd.f32 0.0, %v1426
    %v1428 = vpop.f32.mrb[0].mxu0
    %1429 = vmatprep.mubr.f32.mxu0 %v1350
    %1430 = vmatmul.mubr.f32.gmra.mrb[0].mxu0 %v1341
    %v1431 = vpop.f32.mrb[0].mxu0
    %v1432 = vadd.f32 0.0, %v1431
    %v1433 = vpop.f32.mrb[0].mxu0
    %1434 = vmatprep.mubr.f32.mxu0 %v1353
    %1435 = vmatmul.mubr.f32.gmra.mrb[0].mxu0 %v1342
    %v1436 = vpop.f32.mrb[0].mxu0
    %v1437 = vadd.f32 0.0, %v1436
    %v1438 = vpop.f32.mrb[0].mxu0
    %1439 = vdwg.mxu0
    %v1440 = vmax.f32 %v1422, 0.0
    %v1441 = vmax.f32 %v1427, 0.0
    %v1442 = vmax.f32 %v1432, 0.0
    %v1443 = vmax.f32 %v1437, 0.0
    %v1444 = vrot.slane %v1440, 7
    %v1445 = vrot.slane %v1441, 7
    %v1446 = vrot.slane %v1442, 7
    %v1447 = vrot.slane %v1443, 7
    %v1448 = vsel %vm105, %v1446, %v1447
    %v1449 = vsel %vm105, %v1445, %v1446
    %v1450 = vsel %vm105, %v1444, %v1445
    %v1451 = vsel %vm105, %v1447, %v1444
    %v1452 = vmul.f32 %v1451, %v85
    %v1453 = vmul.f32 %v1450, %v86
    %v1454 = vmul.f32 %v1449, %v87
    %v1455 = vmul.f32 %v1448, %v88
    %v1456 = vrot.slane %v1440, 1
    %v1457 = vrot.slane %v1441, 1
    %v1458 = vrot.slane %v1442, 1
    %v1459 = vrot.slane %v1443, 1
    %v1460 = vsel %vm118, %v1458, %v1459
    %v1461 = vsel %vm118, %v1457, %v1458
    %v1462 = vsel %vm118, %v1456, %v1457
    %v1463 = vsel %vm118, %v1459, %v1456
    %v1464 = vmul.f32 %v1462, %v97
    %v1465 = vmul.f32 %v1461, %v98
    %v1466 = vmul.f32 %v1460, %v99
    %v1467 = vmul.f32 %v1463, %v100
    %1468 = vmatprep.subr.mxu0 0.0
    %1469 = vmatpush1.msra.mxu0 %v726
    %1470 = vmatprep.subr.mxu0 0.0
    %1471 = vmatpush1.msra.mxu0 %v727
    %1472 = vmatprep.subr.mxu0 0.0
    %1473 = vmatpush1.msra.mxu0 %v728
    %1474 = vmatprep.subr.mxu0 0.0
    %1475 = vmatpush1.msra.mxu0 %v729
    %1476 = vmatprep.subr.mxu0 0.0
    %1477 = vmatpush1.msra.mxu0 %v730
    %1478 = vmatprep.subr.mxu0 0.0
    %1479 = vmatpush1.msra.mxu0 %v731
    %1480 = vmatprep.subr.mxu0 0.0
    %1481 = vmatpush1.msra.mxu0 %v732
    %1482 = vmatprep.subr.mxu0 0.0
    %1483 = vmatpush1.msra.mxu0 %v733
    %1484 = vmatprep.subr.mxu0 0.0
    %1485 = vmatpush1.msra.mxu0 %v734
    %1486 = vmatprep.subr.mxu0 0.0
    %1487 = vmatpush1.msra.mxu0 %v735
    %1488 = vmatprep.subr.mxu0 0.0
    %1489 = vmatpush1.msra.mxu0 %v736
    %1490 = vmatprep.subr.mxu0 0.0
    %1491 = vmatpush1.msra.mxu0 %v737
    %1492 = vmatprep.subr.mxu0 0.0
    %1493 = vmatpush1.msra.mxu0 %v738
    %1494 = vmatprep.subr.mxu0 0.0
    %1495 = vmatpush1.msra.mxu0 %v739
    %1496 = vmatprep.subr.mxu0 0.0
    %1497 = vmatpush1.msra.mxu0 %v740
    %1498 = vmatprep.subr.mxu0 0.0
    %1499 = vmatpush1.msra.mxu0 %v741
    %1500 = vmatprep.subr.mxu0 0.0
    %1501 = vmatpush1.msra.mxu0 %v742
    %1502 = vmatprep.subr.mxu0 0.0
    %1503 = vmatpush1.msra.mxu0 %v743
    %1504 = vmatprep.subr.mxu0 0.0
    %1505 = vmatpush1.msra.mxu0 %v744
    %1506 = vmatprep.subr.mxu0 0.0
    %1507 = vmatpush1.msra.mxu0 %v745
    %1508 = vmatprep.subr.mxu0 0.0
    %1509 = vmatpush1.msra.mxu0 %v746
    %1510 = vmatprep.subr.mxu0 0.0
    %1511 = vmatpush1.msra.mxu0 %v747
    %1512 = vmatprep.subr.mxu0 0.0
    %1513 = vmatpush1.msra.mxu0 %v748
    %1514 = vmatprep.subr.mxu0 0.0
    %1515 = vmatpush1.msra.mxu0 %v749
    %1516 = vmatprep.subr.mxu0 0.0
    %1517 = vmatpush1.msra.mxu0 %v750
    %1518 = vmatprep.subr.mxu0 0.0
    %1519 = vmatpush1.msra.mxu0 %v751
    %1520 = vmatprep.subr.mxu0 0.0
    %1521 = vmatpush1.msra.mxu0 %v752
    %1522 = vmatprep.subr.mxu0 0.0
    %1523 = vmatpush1.msra.mxu0 %v753
    %1524 = vmatprep.subr.mxu0 0.0
    %1525 = vmatpush1.msra.mxu0 %v754
    %1526 = vmatprep.subr.mxu0 0.0
    %1527 = vmatpush1.msra.mxu0 %v755
    %1528 = vmatprep.subr.mxu0 0.0
    %1529 = vmatpush1.msra.mxu0 %v756
    %1530 = vmatprep.subr.mxu0 0.0
    %1531 = vmatpush1.msra.mxu0 %v757
    %1532 = vmatprep.mubr.f32.mxu0 %v1440
    %1533 = vmatmul.mubr.f32.gmra.mrb[0].mxu0 %v1452
    %v1534 = vpop.f32.mrb[0].mxu0
    %v1535 = vadd.f32 0.0, %v1534
    %v1536 = vpop.f32.mrb[0].mxu0
    %1537 = vmatprep.mubr.f32.mxu0 %v1441
    %1538 = vmatmul.mubr.f32.gmra.mrb[0].mxu0 %v1453
    %v1539 = vpop.f32.mrb[0].mxu0
    %v1540 = vadd.f32 0.0, %v1539
    %v1541 = vpop.f32.mrb[0].mxu0
    %1542 = vmatprep.mubr.f32.mxu0 %v1442
    %1543 = vmatmul.mubr.f32.gmra.mrb[0].mxu0 %v1454
    %v1544 = vpop.f32.mrb[0].mxu0
    %v1545 = vadd.f32 0.0, %v1544
    %v1546 = vpop.f32.mrb[0].mxu0
    %1547 = vmatprep.mubr.f32.mxu0 %v1443
    %1548 = vmatmul.mubr.f32.gmra.mrb[0].mxu0 %v1455
    %v1549 = vpop.f32.mrb[0].mxu0
    %v1550 = vadd.f32 0.0, %v1549
    %v1551 = vpop.f32.mrb[0].mxu0
    %1552 = vdwg.mxu0
    %1553 = vmatprep.subr.mxu0 0.0
    %1554 = vmatpush1.msra.mxu0 %v758
    %1555 = vmatprep.subr.mxu0 0.0
    %1556 = vmatpush1.msra.mxu0 %v759
    %1557 = vmatprep.subr.mxu0 0.0
    %1558 = vmatpush1.msra.mxu0 %v760
    %1559 = vmatprep.subr.mxu0 0.0
    %1560 = vmatpush1.msra.mxu0 %v761
    %1561 = vmatprep.subr.mxu0 0.0
    %1562 = vmatpush1.msra.mxu0 %v762
    %1563 = vmatprep.subr.mxu0 0.0
    %1564 = vmatpush1.msra.mxu0 %v763
    %1565 = vmatprep.subr.mxu0 0.0
    %1566 = vmatpush1.msra.mxu0 %v764
    %1567 = vmatprep.subr.mxu0 0.0
    %1568 = vmatpush1.msra.mxu0 %v765
    %1569 = vmatprep.subr.mxu0 0.0
    %1570 = vmatpush1.msra.mxu0 %v766
    %1571 = vmatprep.subr.mxu0 0.0
    %1572 = vmatpush1.msra.mxu0 %v767
    %1573 = vmatprep.subr.mxu0 0.0
    %1574 = vmatpush1.msra.mxu0 %v768
    %1575 = vmatprep.subr.mxu0 0.0
    %1576 = vmatpush1.msra.mxu0 %v769
    %1577 = vmatprep.subr.mxu0 0.0
    %1578 = vmatpush1.msra.mxu0 %v770
    %1579 = vmatprep.subr.mxu0 0.0
    %1580 = vmatpush1.msra.mxu0 %v771
    %1581 = vmatprep.subr.mxu0 0.0
    %1582 = vmatpush1.msra.mxu0 %v772
    %1583 = vmatprep.subr.mxu0 0.0
    %1584 = vmatpush1.msra.mxu0 %v773
    %1585 = vmatprep.subr.mxu0 0.0
    %1586 = vmatpush1.msra.mxu0 0.0
    %1587 = vmatprep.subr.mxu0 0.0
    %1588 = vmatpush1.msra.mxu0 0.0
    %1589 = vmatprep.subr.mxu0 0.0
    %1590 = vmatpush1.msra.mxu0 0.0
    %1591 = vmatprep.subr.mxu0 0.0
    %1592 = vmatpush1.msra.mxu0 0.0
    %1593 = vmatprep.subr.mxu0 0.0
    %1594 = vmatpush1.msra.mxu0 0.0
    %1595 = vmatprep.subr.mxu0 0.0
    %1596 = vmatpush1.msra.mxu0 0.0
    %1597 = vmatprep.subr.mxu0 0.0
    %1598 = vmatpush1.msra.mxu0 0.0
    %1599 = vmatprep.subr.mxu0 0.0
    %1600 = vmatpush1.msra.mxu0 0.0
    %1601 = vmatprep.subr.mxu0 0.0
    %1602 = vmatpush1.msra.mxu0 0.0
    %1603 = vmatprep.subr.mxu0 0.0
    %1604 = vmatpush1.msra.mxu0 0.0
    %1605 = vmatprep.subr.mxu0 0.0
    %1606 = vmatpush1.msra.mxu0 0.0
    %1607 = vmatprep.subr.mxu0 0.0
    %1608 = vmatpush1.msra.mxu0 0.0
    %1609 = vmatprep.subr.mxu0 0.0
    %1610 = vmatpush1.msra.mxu0 0.0
    %1611 = vmatprep.subr.mxu0 0.0
    %1612 = vmatpush1.msra.mxu0 0.0
    %1613 = vmatprep.subr.mxu0 0.0
    %1614 = vmatpush1.msra.mxu0 0.0
    %1615 = vmatprep.subr.mxu0 0.0
    %1616 = vmatpush1.msra.mxu0 0.0
    %1617 = vmatprep.mubr.f32.mxu0 0.0
    %1618 = vmatmul.mubr.f32.gmra.mrb[0].mxu0 %v1464
    %v1619 = vpop.f32.mrb[0].mxu0
    %v1620 = vadd.f32 %v1535, %v1619
    %v1621 = vpop.f32.mrb[0].mxu0
    %1622 = vmatprep.mubr.f32.mxu0 0.0
    %1623 = vmatmul.mubr.f32.gmra.mrb[0].mxu0 %v1465
    %v1624 = vpop.f32.mrb[0].mxu0
    %v1625 = vadd.f32 %v1540, %v1624
    %v1626 = vpop.f32.mrb[0].mxu0
    %1627 = vmatprep.mubr.f32.mxu0 0.0
    %1628 = vmatmul.mubr.f32.gmra.mrb[0].mxu0 %v1466
    %v1629 = vpop.f32.mrb[0].mxu0
    %v1630 = vadd.f32 %v1545, %v1629
    %v1631 = vpop.f32.mrb[0].mxu0
    %1632 = vmatprep.mubr.f32.mxu0 0.0
    %1633 = vmatmul.mubr.f32.gmra.mrb[0].mxu0 %v1467
    %v1634 = vpop.f32.mrb[0].mxu0
    %v1635 = vadd.f32 %v1550, %v1634
    %v1636 = vpop.f32.mrb[0].mxu0
    %1637 = vdwg.mxu0
    %v1638 = vmax.f32 %v1620, 0.0
    %v1639 = vmax.f32 %v1625, 0.0
    %v1640 = vmax.f32 %v1630, 0.0
    %v1641 = vmax.f32 %v1635, 0.0
    %v1642 = vsub.f32 %v519, %v1638
    %v1643 = vsub.f32 %v520, %v1639
    %v1644 = vsub.f32 %v521, %v1640
    %v1645 = vsub.f32 %v522, %v1641
    %v1646 = vrot.slane %v1642, 7
    %v1647 = vrot.slane %v1643, 7
    %v1648 = vrot.slane %v1644, 7
    %v1649 = vrot.slane %v1645, 7
    %v1650 = vsel %vm105, %v1648, %v1649
    %v1651 = vsel %vm105, %v1647, %v1648
    %v1652 = vsel %vm105, %v1646, %v1647
    %v1653 = vsel %vm105, %v1649, %v1646
    %v1654 = vmul.f32 %v1653, %v85
    %v1655 = vmul.f32 %v1652, %v86
    %v1656 = vmul.f32 %v1651, %v87
    %v1657 = vmul.f32 %v1650, %v88
    %v1658 = vrot.slane %v1642, 1
    %v1659 = vrot.slane %v1643, 1
    %v1660 = vrot.slane %v1644, 1
    %v1661 = vrot.slane %v1645, 1
    %v1662 = vsel %vm118, %v1660, %v1661
    %v1663 = vsel %vm118, %v1659, %v1660
    %v1664 = vsel %vm118, %v1658, %v1659
    %v1665 = vsel %vm118, %v1661, %v1658
    %v1666 = vmul.f32 %v1664, %v97
    %v1667 = vmul.f32 %v1663, %v98
    %v1668 = vmul.f32 %v1662, %v99
    %v1669 = vmul.f32 %v1665, %v100
    %1674 = vrot.lane.b32.xlu0 %v1642, 64
    %v1675 = vpop.permute.xlu0 %1674
    %1676 = vrot.lane.b32.xlu0 %v1643, 64
    %v1677 = vpop.permute.xlu0 %1676
    %1678 = vrot.lane.b32.xlu0 %v1644, 64
    %v1679 = vpop.permute.xlu0 %1678
    %1680 = vrot.lane.b32.xlu0 %v1645, 64
    %v1681 = vpop.permute.xlu0 %1680
    %v1686 = vsel %vm143, %v1654, %v1675
    %v1687 = vsel %vm143, %v1655, %v1677
    %v1688 = vsel %vm143, %v1656, %v1679
    %v1689 = vsel %vm143, %v1657, %v1681
    %v1691 = vsel %vm143, %v1666, 0
    %v1694 = vsel %vm143, %v1667, 0
    %v1697 = vsel %vm143, %v1668, 0
    %v1700 = vsel %vm143, %v1669, 0
    %1702 = vmatprep.subr.mxu0 0.0
    %1703 = vmatpush1.msra.mxu0 %v577
    %1704 = vmatprep.subr.mxu0 0.0
    %1705 = vmatpush1.msra.mxu0 %v578
    %1706 = vmatprep.subr.mxu0 0.0
    %1707 = vmatpush1.msra.mxu0 %v579
    %1708 = vmatprep.subr.mxu0 0.0
    %1709 = vmatpush1.msra.mxu0 %v580
    %1710 = vmatprep.subr.mxu0 0.0
    %1711 = vmatpush1.msra.mxu0 %v581
    %1712 = vmatprep.subr.mxu0 0.0
    %1713 = vmatpush1.msra.mxu0 %v582
    %1714 = vmatprep.subr.mxu0 0.0
    %1715 = vmatpush1.msra.mxu0 %v583
    %1716 = vmatprep.subr.mxu0 0.0
    %1717 = vmatpush1.msra.mxu0 %v584
    %1718 = vmatprep.subr.mxu0 0.0
    %1719 = vmatpush1.msra.mxu0 %v585
    %1720 = vmatprep.subr.mxu0 0.0
    %1721 = vmatpush1.msra.mxu0 %v586
    %1722 = vmatprep.subr.mxu0 0.0
    %1723 = vmatpush1.msra.mxu0 %v587
    %1724 = vmatprep.subr.mxu0 0.0
    %1725 = vmatpush1.msra.mxu0 %v588
    %1726 = vmatprep.subr.mxu0 0.0
    %1727 = vmatpush1.msra.mxu0 %v589
    %1728 = vmatprep.subr.mxu0 0.0
    %1729 = vmatpush1.msra.mxu0 %v590
    %1730 = vmatprep.subr.mxu0 0.0
    %1731 = vmatpush1.msra.mxu0 %v591
    %1732 = vmatprep.subr.mxu0 0.0
    %1733 = vmatpush1.msra.mxu0 %v592
    %1734 = vmatprep.subr.mxu0 0.0
    %1735 = vmatpush1.msra.mxu0 %v593
    %1736 = vmatprep.subr.mxu0 0.0
    %1737 = vmatpush1.msra.mxu0 %v594
    %1738 = vmatprep.subr.mxu0 0.0
    %1739 = vmatpush1.msra.mxu0 %v595
    %1740 = vmatprep.subr.mxu0 0.0
    %1741 = vmatpush1.msra.mxu0 %v596
    %1742 = vmatprep.subr.mxu0 0.0
    %1743 = vmatpush1.msra.mxu0 %v597
    %1744 = vmatprep.subr.mxu0 0.0
    %1745 = vmatpush1.msra.mxu0 %v598
    %1746 = vmatprep.subr.mxu0 0.0
    %1747 = vmatpush1.msra.mxu0 %v599
    %1748 = vmatprep.subr.mxu0 0.0
    %1749 = vmatpush1.msra.mxu0 %v600
    %1750 = vmatprep.subr.mxu0 0.0
    %1751 = vmatpush1.msra.mxu0 0.0
    %1752 = vmatprep.subr.mxu0 0.0
    %1753 = vmatpush1.msra.mxu0 0.0
    %1754 = vmatprep.subr.mxu0 0.0
    %1755 = vmatpush1.msra.mxu0 0.0
    %1756 = vmatprep.subr.mxu0 0.0
    %1757 = vmatpush1.msra.mxu0 0.0
    %1758 = vmatprep.subr.mxu0 0.0
    %1759 = vmatpush1.msra.mxu0 0.0
    %1760 = vmatprep.subr.mxu0 0.0
    %1761 = vmatpush1.msra.mxu0 0.0
    %1762 = vmatprep.subr.mxu0 0.0
    %1763 = vmatpush1.msra.mxu0 0.0
    %1764 = vmatprep.subr.mxu0 0.0
    %1765 = vmatpush1.msra.mxu0 0.0
    %1766 = vmatprep.mubr.f32.mxu0 %v1691
    %1767 = vmatmul.mubr.f32.gmra.mrb[0].mxu0 %v1686
    %v1768 = vpop.f32.mrb[0].mxu0
    %v1769 = vadd.f32 0.0, %v1768
    %v1770 = vpop.f32.mrb[0].mxu0
    %1771 = vmatprep.mubr.f32.mxu0 %v1694
    %1772 = vmatmul.mubr.f32.gmra.mrb[0].mxu0 %v1687
    %v1773 = vpop.f32.mrb[0].mxu0
    %v1774 = vadd.f32 0.0, %v1773
    %v1775 = vpop.f32.mrb[0].mxu0
    %1776 = vmatprep.mubr.f32.mxu0 %v1697
    %1777 = vmatmul.mubr.f32.gmra.mrb[0].mxu0 %v1688
    %v1778 = vpop.f32.mrb[0].mxu0
    %v1779 = vadd.f32 0.0, %v1778
    %v1780 = vpop.f32.mrb[0].mxu0
    %1781 = vmatprep.mubr.f32.mxu0 %v1700
    %1782 = vmatmul.mubr.f32.gmra.mrb[0].mxu0 %v1689
    %v1783 = vpop.f32.mrb[0].mxu0
    %v1784 = vadd.f32 0.0, %v1783
    %v1785 = vpop.f32.mrb[0].mxu0
    %1786 = vdwg.mxu0
    %v1787 = vmax.f32 %v1769, 0.0
    %v1788 = vmax.f32 %v1774, 0.0
    %v1789 = vmax.f32 %v1779, 0.0
    %v1790 = vmax.f32 %v1784, 0.0
    %v1791 = vrot.slane %v1787, 7
    %v1792 = vrot.slane %v1788, 7
    %v1793 = vrot.slane %v1789, 7
    %v1794 = vrot.slane %v1790, 7
    %v1795 = vsel %vm105, %v1793, %v1794
    %v1796 = vsel %vm105, %v1792, %v1793
    %v1797 = vsel %vm105, %v1791, %v1792
    %v1798 = vsel %vm105, %v1794, %v1791
    %v1799 = vmul.f32 %v1798, %v85
    %v1800 = vmul.f32 %v1797, %v86
    %v1801 = vmul.f32 %v1796, %v87
    %v1802 = vmul.f32 %v1795, %v88
    %v1803 = vrot.slane %v1787, 1
    %v1804 = vrot.slane %v1788, 1
    %v1805 = vrot.slane %v1789, 1
    %v1806 = vrot.slane %v1790, 1
    %v1807 = vsel %vm118, %v1805, %v1806
    %v1808 = vsel %vm118, %v1804, %v1805
    %v1809 = vsel %vm118, %v1803, %v1804
    %v1810 = vsel %vm118, %v1806, %v1803
    %v1811 = vmul.f32 %v1809, %v97
    %v1812 = vmul.f32 %v1808, %v98
    %v1813 = vmul.f32 %v1807, %v99
    %v1814 = vmul.f32 %v1810, %v100
    %1815 = vmatprep.subr.mxu0 0.0
    %1816 = vmatpush1.msra.mxu0 %v726
    %1817 = vmatprep.subr.mxu0 0.0
    %1818 = vmatpush1.msra.mxu0 %v727
    %1819 = vmatprep.subr.mxu0 0.0
    %1820 = vmatpush1.msra.mxu0 %v728
    %1821 = vmatprep.subr.mxu0 0.0
    %1822 = vmatpush1.msra.mxu0 %v729
    %1823 = vmatprep.subr.mxu0 0.0
    %1824 = vmatpush1.msra.mxu0 %v730
    %1825 = vmatprep.subr.mxu0 0.0
    %1826 = vmatpush1.msra.mxu0 %v731
    %1827 = vmatprep.subr.mxu0 0.0
    %1828 = vmatpush1.msra.mxu0 %v732
    %1829 = vmatprep.subr.mxu0 0.0
    %1830 = vmatpush1.msra.mxu0 %v733
    %1831 = vmatprep.subr.mxu0 0.0
    %1832 = vmatpush1.msra.mxu0 %v734
    %1833 = vmatprep.subr.mxu0 0.0
    %1834 = vmatpush1.msra.mxu0 %v735
    %1835 = vmatprep.subr.mxu0 0.0
    %1836 = vmatpush1.msra.mxu0 %v736
    %1837 = vmatprep.subr.mxu0 0.0
    %1838 = vmatpush1.msra.mxu0 %v737
    %1839 = vmatprep.subr.mxu0 0.0
    %1840 = vmatpush1.msra.mxu0 %v738
    %1841 = vmatprep.subr.mxu0 0.0
    %1842 = vmatpush1.msra.mxu0 %v739
    %1843 = vmatprep.subr.mxu0 0.0
    %1844 = vmatpush1.msra.mxu0 %v740
    %1845 = vmatprep.subr.mxu0 0.0
    %1846 = vmatpush1.msra.mxu0 %v741
    %1847 = vmatprep.subr.mxu0 0.0
    %1848 = vmatpush1.msra.mxu0 %v742
    %1849 = vmatprep.subr.mxu0 0.0
    %1850 = vmatpush1.msra.mxu0 %v743
    %1851 = vmatprep.subr.mxu0 0.0
    %1852 = vmatpush1.msra.mxu0 %v744
    %1853 = vmatprep.subr.mxu0 0.0
    %1854 = vmatpush1.msra.mxu0 %v745
    %1855 = vmatprep.subr.mxu0 0.0
    %1856 = vmatpush1.msra.mxu0 %v746
    %1857 = vmatprep.subr.mxu0 0.0
    %1858 = vmatpush1.msra.mxu0 %v747
    %1859 = vmatprep.subr.mxu0 0.0
    %1860 = vmatpush1.msra.mxu0 %v748
    %1861 = vmatprep.subr.mxu0 0.0
    %1862 = vmatpush1.msra.mxu0 %v749
    %1863 = vmatprep.subr.mxu0 0.0
    %1864 = vmatpush1.msra.mxu0 %v750
    %1865 = vmatprep.subr.mxu0 0.0
    %1866 = vmatpush1.msra.mxu0 %v751
    %1867 = vmatprep.subr.mxu0 0.0
    %1868 = vmatpush1.msra.mxu0 %v752
    %1869 = vmatprep.subr.mxu0 0.0
    %1870 = vmatpush1.msra.mxu0 %v753
    %1871 = vmatprep.subr.mxu0 0.0
    %1872 = vmatpush1.msra.mxu0 %v754
    %1873 = vmatprep.subr.mxu0 0.0
    %1874 = vmatpush1.msra.mxu0 %v755
    %1875 = vmatprep.subr.mxu0 0.0
    %1876 = vmatpush1.msra.mxu0 %v756
    %1877 = vmatprep.subr.mxu0 0.0
    %1878 = vmatpush1.msra.mxu0 %v757
    %1879 = vmatprep.mubr.f32.mxu0 %v1787
    %1880 = vmatmul.mubr.f32.gmra.mrb[0].mxu0 %v1799
    %v1881 = vpop.f32.mrb[0].mxu0
    %v1882 = vadd.f32 0.0, %v1881
    %v1883 = vpop.f32.mrb[0].mxu0
    %1884 = vmatprep.mubr.f32.mxu0 %v1788
    %1885 = vmatmul.mubr.f32.gmra.mrb[0].mxu0 %v1800
    %v1886 = vpop.f32.mrb[0].mxu0
    %v1887 = vadd.f32 0.0, %v1886
    %v1888 = vpop.f32.mrb[0].mxu0
    %1889 = vmatprep.mubr.f32.mxu0 %v1789
    %1890 = vmatmul.mubr.f32.gmra.mrb[0].mxu0 %v1801
    %v1891 = vpop.f32.mrb[0].mxu0
    %v1892 = vadd.f32 0.0, %v1891
    %v1893 = vpop.f32.mrb[0].mxu0
    %1894 = vmatprep.mubr.f32.mxu0 %v1790
    %1895 = vmatmul.mubr.f32.gmra.mrb[0].mxu0 %v1802
    %v1896 = vpop.f32.mrb[0].mxu0
    %v1897 = vadd.f32 0.0, %v1896
    %v1898 = vpop.f32.mrb[0].mxu0
    %1899 = vdwg.mxu0
    %1900 = vmatprep.subr.mxu0 0.0
    %1901 = vmatpush1.msra.mxu0 %v758
    %1902 = vmatprep.subr.mxu0 0.0
    %1903 = vmatpush1.msra.mxu0 %v759
    %1904 = vmatprep.subr.mxu0 0.0
    %1905 = vmatpush1.msra.mxu0 %v760
    %1906 = vmatprep.subr.mxu0 0.0
    %1907 = vmatpush1.msra.mxu0 %v761
    %1908 = vmatprep.subr.mxu0 0.0
    %1909 = vmatpush1.msra.mxu0 %v762
    %1910 = vmatprep.subr.mxu0 0.0
    %1911 = vmatpush1.msra.mxu0 %v763
    %1912 = vmatprep.subr.mxu0 0.0
    %1913 = vmatpush1.msra.mxu0 %v764
    %1914 = vmatprep.subr.mxu0 0.0
    %1915 = vmatpush1.msra.mxu0 %v765
    %1916 = vmatprep.subr.mxu0 0.0
    %1917 = vmatpush1.msra.mxu0 %v766
    %1918 = vmatprep.subr.mxu0 0.0
    %1919 = vmatpush1.msra.mxu0 %v767
    %1920 = vmatprep.subr.mxu0 0.0
    %1921 = vmatpush1.msra.mxu0 %v768
    %1922 = vmatprep.subr.mxu0 0.0
    %1923 = vmatpush1.msra.mxu0 %v769
    %1924 = vmatprep.subr.mxu0 0.0
    %1925 = vmatpush1.msra.mxu0 %v770
    %1926 = vmatprep.subr.mxu0 0.0
    %1927 = vmatpush1.msra.mxu0 %v771
    %1928 = vmatprep.subr.mxu0 0.0
    %1929 = vmatpush1.msra.mxu0 %v772
    %1930 = vmatprep.subr.mxu0 0.0
    %1931 = vmatpush1.msra.mxu0 %v773
    %1932 = vmatprep.subr.mxu0 0.0
    %1933 = vmatpush1.msra.mxu0 0.0
    %1934 = vmatprep.subr.mxu0 0.0
    %1935 = vmatpush1.msra.mxu0 0.0
    %1936 = vmatprep.subr.mxu0 0.0
    %1937 = vmatpush1.msra.mxu0 0.0
    %1938 = vmatprep.subr.mxu0 0.0
    %1939 = vmatpush1.msra.mxu0 0.0
    %1940 = vmatprep.subr.mxu0 0.0
    %1941 = vmatpush1.msra.mxu0 0.0
    %1942 = vmatprep.subr.mxu0 0.0
    %1943 = vmatpush1.msra.mxu0 0.0
    %1944 = vmatprep.subr.mxu0 0.0
    %1945 = vmatpush1.msra.mxu0 0.0
    %1946 = vmatprep.subr.mxu0 0.0
    %1947 = vmatpush1.msra.mxu0 0.0
    %1948 = vmatprep.subr.mxu0 0.0
    %1949 = vmatpush1.msra.mxu0 0.0
    %1950 = vmatprep.subr.mxu0 0.0
    %1951 = vmatpush1.msra.mxu0 0.0
    %1952 = vmatprep.subr.mxu0 0.0
    %1953 = vmatpush1.msra.mxu0 0.0
    %1954 = vmatprep.subr.mxu0 0.0
    %1955 = vmatpush1.msra.mxu0 0.0
    %1956 = vmatprep.subr.mxu0 0.0
    %1957 = vmatpush1.msra.mxu0 0.0
    %1958 = vmatprep.subr.mxu0 0.0
    %1959 = vmatpush1.msra.mxu0 0.0
    %1960 = vmatprep.subr.mxu0 0.0
    %1961 = vmatpush1.msra.mxu0 0.0
    %1962 = vmatprep.subr.mxu0 0.0
    %1963 = vmatpush1.msra.mxu0 0.0
    %1964 = vmatprep.mubr.f32.mxu0 0.0
    %1965 = vmatmul.mubr.f32.gmra.mrb[0].mxu0 %v1811
    %v1966 = vpop.f32.mrb[0].mxu0
    %v1967 = vadd.f32 %v1882, %v1966
    %v1968 = vpop.f32.mrb[0].mxu0
    %1969 = vmatprep.mubr.f32.mxu0 0.0
    %1970 = vmatmul.mubr.f32.gmra.mrb[0].mxu0 %v1812
    %v1971 = vpop.f32.mrb[0].mxu0
    %v1972 = vadd.f32 %v1887, %v1971
    %v1973 = vpop.f32.mrb[0].mxu0
    %1974 = vmatprep.mubr.f32.mxu0 0.0
    %1975 = vmatmul.mubr.f32.gmra.mrb[0].mxu0 %v1813
    %v1976 = vpop.f32.mrb[0].mxu0
    %v1977 = vadd.f32 %v1892, %v1976
    %v1978 = vpop.f32.mrb[0].mxu0
    %1979 = vmatprep.mubr.f32.mxu0 0.0
    %1980 = vmatmul.mubr.f32.gmra.mrb[0].mxu0 %v1814
    %v1981 = vpop.f32.mrb[0].mxu0
    %v1982 = vadd.f32 %v1897, %v1981
    %v1983 = vpop.f32.mrb[0].mxu0
    %1984 = vdwg.mxu0
    %v1985 = vmax.f32 %v1967, 0.0
    %v1986 = vmax.f32 %v1972, 0.0
    %v1987 = vmax.f32 %v1977, 0.0
    %v1988 = vmax.f32 %v1982, 0.0
    %v1989 = vsub.f32 %v519, %v1985
    %v1990 = vsub.f32 %v520, %v1986
    %v1991 = vsub.f32 %v521, %v1987
    %v1992 = vsub.f32 %v522, %v1988
  $region26: #{basic_implicit_block_forward.2} parent=0 // loop_footer
    %s528 = sadd.s32 1, %s524
  $region27: #{basic_implicit_block_forward.2} parent=0 // loop_footer_branch
    %523 = sbr.rel target = $region23
  $region28: #{basic_implicit_block_forward.2} parent=0 // loop_exit
    _
  %1993 = vst.msk [vmem:[%s5] sm:$0xff] %vm143, %v529
  %1994 = vst.msk [vmem:[%s5 + $0x8] sm:$0xff] %vm143, %v530
  %1995 = vst.msk [vmem:[%s5 + $0x10] sm:$0xff] %vm143, %v531
  %1996 = vst.msk [vmem:[%s5 + $0x18] sm:$0xff] %vm143, %v532
  // Predicated region
  $region29: #{basic_implicit_block_forward.2} parent=0 // pred_check
    _
  $region30: #{basic_implicit_block_forward.2} parent=0 // pred_check_branch
    %1998 = sbr.rel (0) target = $region32
  $region31: #{basic_implicit_block_forward.2} parent=0 // pred_region
    _
  $region32: #{basic_implicit_block_forward.2} parent=0 // pred_fallthru
    _
  // Predicated region
  $region33: #{basic_implicit_block_forward.2} parent=0 // pred_check
    _
  $region34: #{basic_implicit_block_forward.2} parent=0 // pred_check_branch
    %2000 = sbr.rel (0) target = $region36
  $region35: #{basic_implicit_block_forward.2} parent=0 // pred_region
    _
  $region36: #{basic_implicit_block_forward.2} parent=0 // pred_fallthru
    _

// kernel: tile.13
$region0: #{tile.13}
  #allocation0 [shape = 's32[1]{0}', space=sflag, size = 0x4, scoped, tag = 'scoped memory for tile.13']
  %s0 = inlined_call_operand.vmem [shape: f32[8], index: 0, kind: input, shape index: {}]
  %s1 = inlined_call_operand.vmem [shape: f32[16,8], index: 1, kind: output, shape index: {}]
  // Predicated region
  $region2: #{tile.13} parent=0 // pred_check
    _
  $region3: #{tile.13} parent=0 // pred_check_branch
    %3 = sbr.rel (0) target = $region5
  $region4: #{tile.13} parent=0 // pred_region
    _
  $region5: #{tile.13} parent=0 // pred_fallthru
    _
  %v4 = vld [vmem:[%s0] ss:$0 sm:$0xff]
  %5 = vst [vmem:[%s1] sm:$0xff] %v4
  %s6 = scalar_lea.vmem %s1, 8
  %7 = vst [vmem:[%s6] sm:$0xff] %v4

// kernel: tile.14
$region0: #{tile.14}
  %s0 = inlined_call_operand.vmem [shape: f32[16,8], index: 0, kind: input, shape index: {}]
  %s1 = inlined_call_operand.vmem [shape: f32[1,128], index: 1, kind: output, shape index: {}]
  $region1: #{tile.14} parent=0
    #allocation0 [shape = 'u8[4096]{0}', space=vmem, size = 0x1000, scoped, tag = 'scoped mem for output reshape']
    %v2 = vld [vmem:[%s0] sm:$0x1]
    %vm3 = vcmask 64512
    %4 = vst.msk [vmem:[#allocation0] sm:$0x1] %vm3, %v2
    %s5 = scalar_lea.vmem %s0, 15
    %v6 = vld [vmem:[%s5] sm:$0x1]
    %7 = vrot.lane.b32.xlu0 %v6, 120
    %v8 = vpop.permute.xlu0 %7
    %vm9 = vcmask 1048512
    %10 = vst.msk [vmem:[#allocation0] sm:$0x1] %vm9, %v8
    %s11 = scalar_lea.vmem %s0, 14
    %v12 = vld [vmem:[%s11] sm:$0x1]
    %13 = vrot.lane.b32.xlu0 %v12, 112
    %v14 = vpop.permute.xlu0 %13
    %vm15 = vcmask 982912
    %16 = vst.msk [vmem:[#allocation0] sm:$0x1] %vm15, %v14
    %s17 = scalar_lea.vmem %s0, 13
    %v18 = vld [vmem:[%s17] sm:$0x1]
    %19 = vrot.lane.b32.xlu0 %v18, 104
    %v20 = vpop.permute.xlu0 %19
    %vm21 = vcmask 917312
    %22 = vst.msk [vmem:[#allocation0] sm:$0x1] %vm21, %v20
    %s23 = scalar_lea.vmem %s0, 12
    %v24 = vld [vmem:[%s23] sm:$0x1]
    %25 = vrot.lane.b32.xlu0 %v24, 96
    %v26 = vpop.permute.xlu0 %25
    %vm27 = vcmask 851712
    %28 = vst.msk [vmem:[#allocation0] sm:$0x1] %vm27, %v26
    %s29 = scalar_lea.vmem %s0, 11
    %v30 = vld [vmem:[%s29] sm:$0x1]
    %31 = vrot.lane.b32.xlu0 %v30, 88
    %v32 = vpop.permute.xlu0 %31
    %vm33 = vcmask 786112
    %34 = vst.msk [vmem:[#allocation0] sm:$0x1] %vm33, %v32
    %s35 = scalar_lea.vmem %s0, 10
    %v36 = vld [vmem:[%s35] sm:$0x1]
    %37 = vrot.lane.b32.xlu0 %v36, 80
    %v38 = vpop.permute.xlu0 %37
    %vm39 = vcmask 720512
    %40 = vst.msk [vmem:[#allocation0] sm:$0x1] %vm39, %v38
    %s41 = scalar_lea.vmem %s0, 9
    %v42 = vld [vmem:[%s41] sm:$0x1]
    %43 = vrot.lane.b32.xlu0 %v42, 72
    %v44 = vpop.permute.xlu0 %43
    %vm45 = vcmask 654912
    %46 = vst.msk [vmem:[#allocation0] sm:$0x1] %vm45, %v44
    %s47 = scalar_lea.vmem %s0, 8
    %v48 = vld [vmem:[%s47] sm:$0x1]
    %49 = vrot.lane.b32.xlu0 %v48, 64
    %v50 = vpop.permute.xlu0 %49
    %vm51 = vcmask 589312
    %52 = vst.msk [vmem:[#allocation0] sm:$0x1] %vm51, %v50
    %s53 = scalar_lea.vmem %s0, 7
    %v54 = vld [vmem:[%s53] sm:$0x1]
    %55 = vrot.lane.b32.xlu0 %v54, 56
    %v56 = vpop.permute.xlu0 %55
    %vm57 = vcmask 523712
    %58 = vst.msk [vmem:[#allocation0] sm:$0x1] %vm57, %v56
    %s59 = scalar_lea.vmem %s0, 6
    %v60 = vld [vmem:[%s59] sm:$0x1]
    %61 = vrot.lane.b32.xlu0 %v60, 48
    %v62 = vpop.permute.xlu0 %61
    %vm63 = vcmask 458112
    %64 = vst.msk [vmem:[#allocation0] sm:$0x1] %vm63, %v62
    %s65 = scalar_lea.vmem %s0, 5
    %v66 = vld [vmem:[%s65] sm:$0x1]
    %67 = vrot.lane.b32.xlu0 %v66, 40
    %v68 = vpop.permute.xlu0 %67
    %vm69 = vcmask 392512
    %70 = vst.msk [vmem:[#allocation0] sm:$0x1] %vm69, %v68
    %s71 = scalar_lea.vmem %s0, 4
    %v72 = vld [vmem:[%s71] sm:$0x1]
    %73 = vrot.lane.b32.xlu0 %v72, 32
    %v74 = vpop.permute.xlu0 %73
    %vm75 = vcmask 326912
    %76 = vst.msk [vmem:[#allocation0] sm:$0x1] %vm75, %v74
    %s77 = scalar_lea.vmem %s0, 3
    %v78 = vld [vmem:[%s77] sm:$0x1]
    %79 = vrot.lane.b32.xlu0 %v78, 24
    %v80 = vpop.permute.xlu0 %79
    %vm81 = vcmask 261312
    %82 = vst.msk [vmem:[#allocation0] sm:$0x1] %vm81, %v80
    %s83 = scalar_lea.vmem %s0, 2
    %v84 = vld [vmem:[%s83] sm:$0x1]
    %85 = vrot.lane.b32.xlu0 %v84, 16
    %v86 = vpop.permute.xlu0 %85
    %vm87 = vcmask 195712
    %88 = vst.msk [vmem:[#allocation0] sm:$0x1] %vm87, %v86
    %s89 = scalar_lea.vmem %s0, 1
    %v90 = vld [vmem:[%s89] sm:$0x1]
    %91 = vrot.lane.b32.xlu0 %v90, 8
    %v92 = vpop.permute.xlu0 %91
    %vm93 = vcmask 130112
    %94 = vst.msk [vmem:[#allocation0] sm:$0x1] %vm93, %v92
    %s96 = sshllo.u32 0, 1
    %v98 = vld [vmem:[#allocation0] sm:%s96]
    %s99 = sshllo.u32 0, 1
    %100 = vst [vmem:[%s1] sm:%s99] %v98

// kernel: basic_implicit_block_forward.3
$region0: #{basic_implicit_block_forward.3}
  #allocation0 [shape = 'u32[]', space=smem, size = 0x4, offset = 0x4, fixed_abs, tag = 'smem constant byte address 0x4 - core index']
  #allocation1 [shape = 'u32[144,128]{1,0:T(1,128)}', space=vmem, size = 0x12000, scoped, tag = 'internal scratch']
  %s0 = inlined_call_operand.vmem [shape: f32[32,64], index: 0, kind: input, shape index: {}]
  %s1 = inlined_call_operand.vmem [shape: f32[64,128], index: 1, kind: input, shape index: {}]
  %s2 = inlined_call_operand.vmem [shape: f32[128,128], index: 2, kind: input, shape index: {}]
  %s3 = inlined_call_operand.vmem [shape: f32[1,128], index: 3, kind: input, shape index: {}]
  %s4 = inlined_call_operand.vmem [shape: f32[1,128], index: 4, kind: input, shape index: {}]
  %s5 = inlined_call_operand.vmem [shape: f32[32,128], index: 5, kind: output, shape index: {}]
  %s6 = sld [smem:[#allocation0]]
  $region30: #{basic_implicit_block_forward.3} parent=0
    _
  %s8 = ssub.s32 1, %s6
  %s9 = scalar_select 0, %s8, %s6
  // Predicated region
  $region2: #{basic_implicit_block_forward.3} parent=0 // pred_check
    _
  $region3: #{basic_implicit_block_forward.3} parent=0 // pred_check_branch
    %11 = sbr.rel (0) target = $region5
  $region4: #{basic_implicit_block_forward.3} parent=0 // pred_region
    _
  $region5: #{basic_implicit_block_forward.3} parent=0 // pred_fallthru
    _
  // Predicated region
  $region6: #{basic_implicit_block_forward.3} parent=0 // pred_check
    _
  $region7: #{basic_implicit_block_forward.3} parent=0 // pred_check_branch
    %13 = sbr.rel (0) target = $region9
  $region8: #{basic_implicit_block_forward.3} parent=0 // pred_region
    _
  $region9: #{basic_implicit_block_forward.3} parent=0 // pred_fallthru
    _
  // Predicated region
  $region10: #{basic_implicit_block_forward.3} parent=0 // pred_check
    _
  $region11: #{basic_implicit_block_forward.3} parent=0 // pred_check_branch
    %15 = sbr.rel (0) target = $region13
  $region12: #{basic_implicit_block_forward.3} parent=0 // pred_region
    _
  $region13: #{basic_implicit_block_forward.3} parent=0 // pred_fallthru
    _
  // Predicated region
  $region14: #{basic_implicit_block_forward.3} parent=0 // pred_check
    _
  $region15: #{basic_implicit_block_forward.3} parent=0 // pred_check_branch
    %17 = sbr.rel (0) target = $region17
  $region16: #{basic_implicit_block_forward.3} parent=0 // pred_region
    _
  $region17: #{basic_implicit_block_forward.3} parent=0 // pred_fallthru
    _
  // Predicated region
  $region18: #{basic_implicit_block_forward.3} parent=0 // pred_check
    _
  $region19: #{basic_implicit_block_forward.3} parent=0 // pred_check_branch
    %19 = sbr.rel (0) target = $region21
  $region20: #{basic_implicit_block_forward.3} parent=0 // pred_region
    _
  $region21: #{basic_implicit_block_forward.3} parent=0 // pred_fallthru
    _
  %v20 = vld [vmem:[%s0] sm:$0xff]
  %v21 = vld [vmem:[%s0 + $0x8] sm:$0xff]
  %v22 = vld [vmem:[%s0 + $0x10] sm:$0xff]
  %v23 = vld [vmem:[%s0 + $0x18] sm:$0xff]
  %v24 = vld [vmem:[%s1] sm:$0xff]
  %v25 = vld [vmem:[%s1 + $0x8] sm:$0xff]
  %v26 = vld [vmem:[%s1 + $0x10] sm:$0xff]
  %v27 = vld [vmem:[%s1 + $0x18] sm:$0xff]
  %v28 = vld [vmem:[%s1 + $0x20] sm:$0xff]
  %v29 = vld [vmem:[%s1 + $0x28] sm:$0xff]
  %v30 = vld [vmem:[%s1 + $0x30] sm:$0xff]
  %v31 = vld [vmem:[%s1 + $0x38] sm:$0xff]
  %vm32 = vcmask 523264
  %v34 = vsel %vm32, %v20, 0
  %v37 = vsel %vm32, %v21, 0
  %v40 = vsel %vm32, %v22, 0
  %v43 = vsel %vm32, %v23, 0
  %45 = vmatprep.subr.mxu0 0.0
  %46 = vmatpush1.msra.mxu0 %v24
  %47 = vmatprep.subr.mxu0 0.0
  %48 = vmatpush1.msra.mxu0 %v25
  %49 = vmatprep.subr.mxu0 0.0
  %50 = vmatpush1.msra.mxu0 %v26
  %51 = vmatprep.subr.mxu0 0.0
  %52 = vmatpush1.msra.mxu0 %v27
  %53 = vmatprep.subr.mxu0 0.0
  %54 = vmatpush1.msra.mxu0 %v28
  %55 = vmatprep.subr.mxu0 0.0
  %56 = vmatpush1.msra.mxu0 %v29
  %57 = vmatprep.subr.mxu0 0.0
  %58 = vmatpush1.msra.mxu0 %v30
  %59 = vmatprep.subr.mxu0 0.0
  %60 = vmatpush1.msra.mxu0 %v31
  %61 = vmatprep.subr.mxu0 0.0
  %62 = vmatpush1.msra.mxu0 0.0
  %63 = vmatprep.subr.mxu0 0.0
  %64 = vmatpush1.msra.mxu0 0.0
  %65 = vmatprep.subr.mxu0 0.0
  %66 = vmatpush1.msra.mxu0 0.0
  %67 = vmatprep.subr.mxu0 0.0
  %68 = vmatpush1.msra.mxu0 0.0
  %69 = vmatprep.subr.mxu0 0.0
  %70 = vmatpush1.msra.mxu0 0.0
  %71 = vmatprep.subr.mxu0 0.0
  %72 = vmatpush1.msra.mxu0 0.0
  %73 = vmatprep.subr.mxu0 0.0
  %74 = vmatpush1.msra.mxu0 0.0
  %75 = vmatprep.subr.mxu0 0.0
  %76 = vmatpush1.msra.mxu0 0.0
  %77 = vmatprep.subr.mxu0 0.0
  %78 = vmatpush1.msra.mxu0 0.0
  %79 = vmatprep.subr.mxu0 0.0
  %80 = vmatpush1.msra.mxu0 0.0
  %81 = vmatprep.subr.mxu0 0.0
  %82 = vmatpush1.msra.mxu0 0.0
  %83 = vmatprep.subr.mxu0 0.0
  %84 = vmatpush1.msra.mxu0 0.0
  %85 = vmatprep.subr.mxu0 0.0
  %86 = vmatpush1.msra.mxu0 0.0
  %87 = vmatprep.subr.mxu0 0.0
  %88 = vmatpush1.msra.mxu0 0.0
  %89 = vmatprep.subr.mxu0 0.0
  %90 = vmatpush1.msra.mxu0 0.0
  %91 = vmatprep.subr.mxu0 0.0
  %92 = vmatpush1.msra.mxu0 0.0
  %93 = vmatprep.subr.mxu0 0.0
  %94 = vmatpush1.msra.mxu0 0.0
  %95 = vmatprep.subr.mxu0 0.0
  %96 = vmatpush1.msra.mxu0 0.0
  %97 = vmatprep.subr.mxu0 0.0
  %98 = vmatpush1.msra.mxu0 0.0
  %99 = vmatprep.subr.mxu0 0.0
  %100 = vmatpush1.msra.mxu0 0.0
  %101 = vmatprep.subr.mxu0 0.0
  %102 = vmatpush1.msra.mxu0 0.0
  %103 = vmatprep.subr.mxu0 0.0
  %104 = vmatpush1.msra.mxu0 0.0
  %105 = vmatprep.subr.mxu0 0.0
  %106 = vmatpush1.msra.mxu0 0.0
  %107 = vmatprep.subr.mxu0 0.0
  %108 = vmatpush1.msra.mxu0 0.0
  %109 = vmatprep.mubr.f32.mxu0 0.0
  %110 = vmatmul.mubr.f32.gmra.mrb[0].mxu0 %v34
  %v111 = vpop.f32.mrb[0].mxu0
  %v112 = vadd.f32 0.0, %v111
  %v113 = vpop.f32.mrb[0].mxu0
  %114 = vmatprep.mubr.f32.mxu0 0.0
  %115 = vmatmul.mubr.f32.gmra.mrb[0].mxu0 %v37
  %v116 = vpop.f32.mrb[0].mxu0
  %v117 = vadd.f32 0.0, %v116
  %v118 = vpop.f32.mrb[0].mxu0
  %119 = vmatprep.mubr.f32.mxu0 0.0
  %120 = vmatmul.mubr.f32.gmra.mrb[0].mxu0 %v40
  %v121 = vpop.f32.mrb[0].mxu0
  %v122 = vadd.f32 0.0, %v121
  %v123 = vpop.f32.mrb[0].mxu0
  %124 = vmatprep.mubr.f32.mxu0 0.0
  %125 = vmatmul.mubr.f32.gmra.mrb[0].mxu0 %v43
  %v126 = vpop.f32.mrb[0].mxu0
  %v127 = vadd.f32 0.0, %v126
  %v128 = vpop.f32.mrb[0].mxu0
  %129 = vdwg.mxu0
  %v130 = vadd.f32 %v112, %v117
  %v131 = vadd.f32 %v130, %v122
  %v132 = vadd.f32 %v131, %v127
  %v133 = vrot.slane %v132, 4
  %v134 = vadd.f32 %v132, %v133
  %v135 = vrot.slane %v134, 2
  %v136 = vadd.f32 %v134, %v135
  %v137 = vrot.slane %v136, 1
  %v138 = vadd.f32 %v136, %v137
  %v139 = vld [vmem:[%s2] sm:$0xff]
  %v140 = vld [vmem:[%s2 + $0x8] sm:$0xff]
  %v141 = vld [vmem:[%s2 + $0x10] sm:$0xff]
  %v142 = vld [vmem:[%s2 + $0x18] sm:$0xff]
  %v143 = vld [vmem:[%s2 + $0x20] sm:$0xff]
  %v144 = vld [vmem:[%s2 + $0x28] sm:$0xff]
  %v145 = vld [vmem:[%s2 + $0x30] sm:$0xff]
  %v146 = vld [vmem:[%s2 + $0x38] sm:$0xff]
  %v147 = vld [vmem:[%s2 + $0x40] sm:$0xff]
  %v148 = vld [vmem:[%s2 + $0x48] sm:$0xff]
  %v149 = vld [vmem:[%s2 + $0x50] sm:$0xff]
  %v150 = vld [vmem:[%s2 + $0x58] sm:$0xff]
  %v151 = vld [vmem:[%s2 + $0x60] sm:$0xff]
  %v152 = vld [vmem:[%s2 + $0x68] sm:$0xff]
  %v153 = vld [vmem:[%s2 + $0x70] sm:$0xff]
  %v154 = vld [vmem:[%s2 + $0x78] sm:$0xff]
  %155 = vmatprep.subr.mxu0 0.0
  %156 = vmatpush1.msra.mxu0 %v139
  %157 = vmatprep.subr.mxu0 0.0
  %158 = vmatpush1.msra.mxu0 %v140
  %159 = vmatprep.subr.mxu0 0.0
  %160 = vmatpush1.msra.mxu0 %v141
  %161 = vmatprep.subr.mxu0 0.0
  %162 = vmatpush1.msra.mxu0 %v142
  %163 = vmatprep.subr.mxu0 0.0
  %164 = vmatpush1.msra.mxu0 %v143
  %165 = vmatprep.subr.mxu0 0.0
  %166 = vmatpush1.msra.mxu0 %v144
  %167 = vmatprep.subr.mxu0 0.0
  %168 = vmatpush1.msra.mxu0 %v145
  %169 = vmatprep.subr.mxu0 0.0
  %170 = vmatpush1.msra.mxu0 %v146
  %171 = vmatprep.subr.mxu0 0.0
  %172 = vmatpush1.msra.mxu0 %v147
  %173 = vmatprep.subr.mxu0 0.0
  %174 = vmatpush1.msra.mxu0 %v148
  %175 = vmatprep.subr.mxu0 0.0
  %176 = vmatpush1.msra.mxu0 %v149
  %177 = vmatprep.subr.mxu0 0.0
  %178 = vmatpush1.msra.mxu0 %v150
  %179 = vmatprep.subr.mxu0 0.0
  %180 = vmatpush1.msra.mxu0 %v151
  %181 = vmatprep.subr.mxu0 0.0
  %182 = vmatpush1.msra.mxu0 %v152
  %183 = vmatprep.subr.mxu0 0.0
  %184 = vmatpush1.msra.mxu0 %v153
  %185 = vmatprep.subr.mxu0 0.0
  %186 = vmatpush1.msra.mxu0 %v154
  %187 = vmatprep.subr.mxu0 0.0
  %188 = vmatpush1.msra.mxu0 0.0
  %189 = vmatprep.subr.mxu0 0.0
  %190 = vmatpush1.msra.mxu0 0.0
  %191 = vmatprep.subr.mxu0 0.0
  %192 = vmatpush1.msra.mxu0 0.0
  %193 = vmatprep.subr.mxu0 0.0
  %194 = vmatpush1.msra.mxu0 0.0
  %195 = vmatprep.subr.mxu0 0.0
  %196 = vmatpush1.msra.mxu0 0.0
  %197 = vmatprep.subr.mxu0 0.0
  %198 = vmatpush1.msra.mxu0 0.0
  %199 = vmatprep.subr.mxu0 0.0
  %200 = vmatpush1.msra.mxu0 0.0
  %201 = vmatprep.subr.mxu0 0.0
  %202 = vmatpush1.msra.mxu0 0.0
  %203 = vmatprep.subr.mxu0 0.0
  %204 = vmatpush1.msra.mxu0 0.0
  %205 = vmatprep.subr.mxu0 0.0
  %206 = vmatpush1.msra.mxu0 0.0
  %207 = vmatprep.subr.mxu0 0.0
  %208 = vmatpush1.msra.mxu0 0.0
  %209 = vmatprep.subr.mxu0 0.0
  %210 = vmatpush1.msra.mxu0 0.0
  %211 = vmatprep.subr.mxu0 0.0
  %212 = vmatpush1.msra.mxu0 0.0
  %213 = vmatprep.subr.mxu0 0.0
  %214 = vmatpush1.msra.mxu0 0.0
  %215 = vmatprep.subr.mxu0 0.0
  %216 = vmatpush1.msra.mxu0 0.0
  %217 = vmatprep.subr.mxu0 0.0
  %218 = vmatpush1.msra.mxu0 0.0
  %219 = vmatprep.mubr.f32.mxu0 0.0
  %220 = vmatmul.mubr.f32.gmra.mrb[0].mxu0 %v138
  %v221 = vpop.f32.mrb[0].mxu0
  %v222 = vadd.f32 0.0, %v221
  %v223 = vpop.f32.mrb[0].mxu0
  %224 = vdwg.mxu0
  %v225 = vlaneseq
  %v226 = vshrl.u32 %v225, 7
  %v227 = vsub.s32 0, %v226
  %v228 = vrot.slane %v222, %v227
  %v229 = vsub.f32 %v112, %v228
  %v230 = vsub.f32 %v117, %v228
  %v231 = vsub.f32 %v122, %v228
  %v232 = vsub.f32 %v127, %v228
  %v233 = vmul.f32 %v229, %v229
  %v234 = vmul.f32 %v230, %v230
  %v235 = vmul.f32 %v231, %v231
  %v236 = vmul.f32 %v232, %v232
  %v237 = vadd.f32 %v233, %v234
  %v238 = vadd.f32 %v237, %v235
  %v239 = vadd.f32 %v238, %v236
  %v240 = vrot.slane %v239, 4
  %v241 = vadd.f32 %v239, %v240
  %v242 = vrot.slane %v241, 2
  %v243 = vadd.f32 %v241, %v242
  %v244 = vrot.slane %v243, 1
  %v245 = vadd.f32 %v243, %v244
  %246 = vmatprep.subr.mxu0 0.0
  %247 = vmatpush1.msra.mxu0 %v139
  %248 = vmatprep.subr.mxu0 0.0
  %249 = vmatpush1.msra.mxu0 %v140
  %250 = vmatprep.subr.mxu0 0.0
  %251 = vmatpush1.msra.mxu0 %v141
  %252 = vmatprep.subr.mxu0 0.0
  %253 = vmatpush1.msra.mxu0 %v142
  %254 = vmatprep.subr.mxu0 0.0
  %255 = vmatpush1.msra.mxu0 %v143
  %256 = vmatprep.subr.mxu0 0.0
  %257 = vmatpush1.msra.mxu0 %v144
  %258 = vmatprep.subr.mxu0 0.0
  %259 = vmatpush1.msra.mxu0 %v145
  %260 = vmatprep.subr.mxu0 0.0
  %261 = vmatpush1.msra.mxu0 %v146
  %262 = vmatprep.subr.mxu0 0.0
  %263 = vmatpush1.msra.mxu0 %v147
  %264 = vmatprep.subr.mxu0 0.0
  %265 = vmatpush1.msra.mxu0 %v148
  %266 = vmatprep.subr.mxu0 0.0
  %267 = vmatpush1.msra.mxu0 %v149
  %268 = vmatprep.subr.mxu0 0.0
  %269 = vmatpush1.msra.mxu0 %v150
  %270 = vmatprep.subr.mxu0 0.0
  %271 = vmatpush1.msra.mxu0 %v151
  %272 = vmatprep.subr.mxu0 0.0
  %273 = vmatpush1.msra.mxu0 %v152
  %274 = vmatprep.subr.mxu0 0.0
  %275 = vmatpush1.msra.mxu0 %v153
  %276 = vmatprep.subr.mxu0 0.0
  %277 = vmatpush1.msra.mxu0 %v154
  %278 = vmatprep.subr.mxu0 0.0
  %279 = vmatpush1.msra.mxu0 0.0
  %280 = vmatprep.subr.mxu0 0.0
  %281 = vmatpush1.msra.mxu0 0.0
  %282 = vmatprep.subr.mxu0 0.0
  %283 = vmatpush1.msra.mxu0 0.0
  %284 = vmatprep.subr.mxu0 0.0
  %285 = vmatpush1.msra.mxu0 0.0
  %286 = vmatprep.subr.mxu0 0.0
  %287 = vmatpush1.msra.mxu0 0.0
  %288 = vmatprep.subr.mxu0 0.0
  %289 = vmatpush1.msra.mxu0 0.0
  %290 = vmatprep.subr.mxu0 0.0
  %291 = vmatpush1.msra.mxu0 0.0
  %292 = vmatprep.subr.mxu0 0.0
  %293 = vmatpush1.msra.mxu0 0.0
  %294 = vmatprep.subr.mxu0 0.0
  %295 = vmatpush1.msra.mxu0 0.0
  %296 = vmatprep.subr.mxu0 0.0
  %297 = vmatpush1.msra.mxu0 0.0
  %298 = vmatprep.subr.mxu0 0.0
  %299 = vmatpush1.msra.mxu0 0.0
  %300 = vmatprep.subr.mxu0 0.0
  %301 = vmatpush1.msra.mxu0 0.0
  %302 = vmatprep.subr.mxu0 0.0
  %303 = vmatpush1.msra.mxu0 0.0
  %304 = vmatprep.subr.mxu0 0.0
  %305 = vmatpush1.msra.mxu0 0.0
  %306 = vmatprep.subr.mxu0 0.0
  %307 = vmatpush1.msra.mxu0 0.0
  %308 = vmatprep.subr.mxu0 0.0
  %309 = vmatpush1.msra.mxu0 0.0
  %310 = vmatprep.mubr.f32.mxu0 0.0
  %311 = vmatmul.mubr.f32.gmra.mrb[0].mxu0 %v245
  %v312 = vpop.f32.mrb[0].mxu0
  %v313 = vadd.f32 1e-05, %v312
  %v314 = vpop.f32.mrb[0].mxu0
  %315 = vdwg.mxu0
  %v316 = vrsqrt.pop %v313
  %v317 = vlaneseq
  %v318 = vshrl.u32 %v317, 7
  %v319 = vsub.s32 0, %v318
  %v320 = vrot.slane %v316, %v319
  %v321 = vmul.f32 %v229, %v320
  %v322 = vmul.f32 %v230, %v320
  %v323 = vmul.f32 %v231, %v320
  %v324 = vmul.f32 %v232, %v320
  %v325 = vld [vmem:[%s3] sm:$0x1]
  %v327 = vlaneseq
  %v328 = vshrl.u32 %v327, 7
  %v329 = vsub.s32 0, %v328
  %v330 = vrot.slane %v325, %v329
  %v332 = vmul.f32 %v321, %v330
  %v333 = vmul.f32 %v322, %v330
  %v334 = vmul.f32 %v323, %v330
  %v335 = vmul.f32 %v324, %v330
  %v336 = vld [vmem:[%s4] sm:$0x1]
  %v338 = vlaneseq
  %v339 = vshrl.u32 %v338, 7
  %v340 = vsub.s32 0, %v339
  %v341 = vrot.slane %v336, %v340
  %v343 = vadd.f32 %v332, %v341
  %v344 = vadd.f32 %v333, %v341
  %v345 = vadd.f32 %v334, %v341
  %v346 = vadd.f32 %v335, %v341
  %v347 = vmax.f32 %v343, 0.0
  %v348 = vmax.f32 %v344, 0.0
  %v349 = vmax.f32 %v345, 0.0
  %v350 = vmax.f32 %v346, 0.0
  %351 = vst [vmem:[%s5] sm:$0xff] %v347
  %352 = vst [vmem:[%s5 + $0x8] sm:$0xff] %v348
  %353 = vst [vmem:[%s5 + $0x10] sm:$0xff] %v349
  %354 = vst [vmem:[%s5 + $0x18] sm:$0xff] %v350
  // Predicated region
  $region22: #{basic_implicit_block_forward.3} parent=0 // pred_check
    _
  $region23: #{basic_implicit_block_forward.3} parent=0 // pred_check_branch
    %356 = sbr.rel (0) target = $region25
  $region24: #{basic_implicit_block_forward.3} parent=0 // pred_region
    _
  $region25: #{basic_implicit_block_forward.3} parent=0 // pred_fallthru
    _
  // Predicated region
  $region26: #{basic_implicit_block_forward.3} parent=0 // pred_check
    _
  $region27: #{basic_implicit_block_forward.3} parent=0 // pred_check_branch
    %358 = sbr.rel (0) target = $region29
  $region28: #{basic_implicit_block_forward.3} parent=0 // pred_region
    _
  $region29: #{basic_implicit_block_forward.3} parent=0 // pred_fallthru
    _

</llo_original>
